<compile_context>
chip_gen: v5e
topology: v5e:2x2
jax: 0.10.0
libtpu: 0.0.40
codegen_flags: <defaults>
</compile_context>

<pallas_src>
import jax
import jax.numpy as jnp
import numpy as np
from jax import lax
from jax.experimental import pallas as pl
from jax.experimental.pallas import tpu as pltpu

# ----------------------------- config (small, lane-dense) --------------------
S = 8           # sequence length
H = 128         # hidden size (stands in for 768) -- lane-dense last dim
V = 128         # vocab size (after adding '<rep>') -- lane-dense
NH = 4          # attention heads
DH = H // NH    # head dim
L = 2           # transformer layers
K = 8           # number of bag-of-words key ids
BOW_WT = 0.5    # args['m']
REP_TOKEN_ID = V - 1
LN_EPS = 1e-5
NEG_INF = -1e30  # f32-safe additive mask value


# ----------------------------- in-kernel helpers ------------------------------
def _layernorm(x, g, b):
    mu = jnp.mean(x, axis=-1, keepdims=True)
    var = jnp.mean((x - mu) ** 2, axis=-1, keepdims=True)
    return (x - mu) * lax.rsqrt(var + LN_EPS) * g + b


def _gelu_new(x):
    c = 0.7978845608028654  # sqrt(2/pi)
    return 0.5 * x * (1.0 + jnp.tanh(c * (x + 0.044715 * x * x * x)))


# ----------------------------- fused Pallas kernel ----------------------------
def fused_forward_kernel(idx_ref,                                   # SMEM scalar prefetch: (1,) rep-row index
                         ids_ref, labels_ref, keyids_ref,           # (S,1) (S,1) (K,1) int32
                         wte_ref, wpe_ref, lnf_ref, boww_ref,       # (V,H) (S,H) (2,H) (V,H)
                         small_ref, wqkv_ref, wo_ref, wfc_ref, wproj_ref,  # per-layer (blocked over L)
                         loss_ref,                                  # (1,1) output
                         h_scr):                                    # (S,H) VMEM scratch (persists across layers)
    l = pl.program_id(0)
    last = pl.num_programs(0) - 1

    # ---------------- step 0: token+position embedding (gather fused in) ------
    @pl.when(l == 0)
    def _():
        ids = ids_ref[...]                                           # (S,1) int32
        onehot = (lax.broadcasted_iota(jnp.int32, (S, V), 1) == ids).astype(jnp.float32)
        h_scr[...] = (jnp.dot(onehot, wte_ref[...],
                              preferred_element_type=jnp.float32) + wpe_ref[...])
        loss_ref[...] = jnp.zeros_like(loss_ref)

    # ---------------- transformer block l (pre-LN GPT-2) ----------------------
    small = small_ref[0]                                             # (8, 4H) packed tiny params
    ln1g = small[0:1, 0:H]
    ln1b = small[1:2, 0:H]
    ln2g = small[2:3, 0:H]
    ln2b = small[3:4, 0:H]
    bo = small[4:5, 0:H]
    bproj = small[5:6, 0:H]
    bqkv = small[6:7, 0:3 * H]
    bfc = small[7:8, 0:4 * H]

    h = h_scr[...]                                                   # (S, H)
    x = _layernorm(h, ln1g, ln1b)
    qkv = jnp.dot(x, wqkv_ref[0], preferred_element_type=jnp.float32) + bqkv
    q = qkv[:, 0:H]
    k = qkv[:, H:2 * H]
    v = qkv[:, 2 * H:3 * H]

    row = lax.broadcasted_iota(jnp.int32, (S, S), 0)
    col = lax.broadcasted_iota(jnp.int32, (S, S), 1)
    causal = col <= row
    scale = 1.0 / jnp.sqrt(float(DH))

    attn_heads = []
    for hh in range(NH):                                             # static unroll
        qh = q[:, hh * DH:(hh + 1) * DH]
        kh = k[:, hh * DH:(hh + 1) * DH]
        vh = v[:, hh * DH:(hh + 1) * DH]
        sc = lax.dot_general(qh, kh, (((1,), (1,)), ((), ())),
                             preferred_element_type=jnp.float32) * scale
        sc = jnp.where(causal, sc, NEG_INF)
        m = jnp.max(sc, axis=-1, keepdims=True)
        p = jnp.exp(sc - m)
        # EUP approx reciprocal keeps the normalization off the VALU.
        p = p * pl.reciprocal(jnp.sum(p, axis=-1, keepdims=True), approx=True)
        attn_heads.append(jnp.dot(p, vh, preferred_element_type=jnp.float32))
    attn = jnp.concatenate(attn_heads, axis=-1)                      # (S, H) merged heads
    h = h + jnp.dot(attn, wo_ref[0], preferred_element_type=jnp.float32) + bo

    x2 = _layernorm(h, ln2g, ln2b)
    f = jnp.dot(x2, wfc_ref[0], preferred_element_type=jnp.float32) + bfc
    f = _gelu_new(f)
    h = h + jnp.dot(f, wproj_ref[0], preferred_element_type=jnp.float32) + bproj
    h_scr[...] = h

    # ---------------- last step: ln_f -> LM CE + bow CE -> loss ---------------
    @pl.when(l == last)
    def _():
        lnf_g = lnf_ref[0:1, :]
        lnf_b = lnf_ref[1:2, :]
        hf = _layernorm(h, lnf_g, lnf_b)                             # (S, H)

        # LM cross-entropy over shifted labels (ignore_index = -100), tied wte.
        logits = lax.dot_general(hf, wte_ref[...], (((1,), (1,)), ((), ())),
                                 preferred_element_type=jnp.float32)  # (S, V)
        m = jnp.max(logits, axis=-1, keepdims=True)
        lse = m + jnp.log(jnp.sum(jnp.exp(logits - m), axis=-1, keepdims=True))
        logp = logits - lse
        labels = labels_ref[...]                                     # (S,1) int32
        onehot = (lax.broadcasted_iota(jnp.int32, (S, V), 1) == labels).astype(jnp.float32)
        valid = (labels != -100).astype(jnp.float32)
        tok_nll = -jnp.sum(onehot * logp, axis=-1, keepdims=True) * valid
        lm_loss = (jnp.sum(tok_nll, axis=0, keepdims=True)
                   / jnp.maximum(jnp.sum(valid, axis=0, keepdims=True), 1.0))   # (1,1)

        # Bag-of-words loss at the '<rep>' row: direct dynamic-slice of the
        # final hidden state, then ln_f on that single row.
        idx = idx_ref[0]
        h_row = h_scr[pl.ds(idx, 1), :]                              # (1, H)
        hf_row = _layernorm(h_row, lnf_g, lnf_b)
        bow_logits = lax.dot_general(hf_row, boww_ref[...], (((1,), (1,)), ((), ())),
                                     preferred_element_type=jnp.float32)        # (1, V)
        bm = jnp.max(bow_logits, axis=-1, keepdims=True)
        blse = bm + jnp.log(jnp.sum(jnp.exp(bow_logits - bm), axis=-1, keepdims=True))
        blogp = bow_logits - blse                                    # (1, V)
        bow_ids = keyids_ref[...]                                    # (K,1) int32
        bow_oh = (lax.broadcasted_iota(jnp.int32, (K, V), 1) == bow_ids).astype(jnp.float32)
        bvalid = (bow_ids != -100).astype(jnp.float32)
        bow_nll = -jnp.sum(bow_oh * blogp, axis=-1, keepdims=True) * bvalid
        bow_loss = (jnp.sum(bow_nll, axis=0, keepdims=True)
                    / jnp.maximum(jnp.sum(bvalid, axis=0, keepdims=True), 1.0))  # (1,1)

        loss_ref[...] = BOW_WT * bow_loss + lm_loss


# ----------------------------- pallas_call wrapper -----------------------------
_GRID_SPEC = pltpu.PrefetchScalarGridSpec(
    num_scalar_prefetch=1,                       # rep-token row index (SMEM)
    grid=(L,),
    in_specs=[
        pl.BlockSpec((S, 1), lambda l, idx: (0, 0)),           # ids
        pl.BlockSpec((S, 1), lambda l, idx: (0, 0)),           # shifted labels
        pl.BlockSpec((K, 1), lambda l, idx: (0, 0)),           # key ids
        pl.BlockSpec((V, H), lambda l, idx: (0, 0)),           # wte (tied head)
        pl.BlockSpec((S, H), lambda l, idx: (0, 0)),           # wpe
        pl.BlockSpec((2, H), lambda l, idx: (0, 0)),           # ln_f gain/bias packed
        pl.BlockSpec((V, H), lambda l, idx: (0, 0)),           # bow head weight
        pl.BlockSpec((1, 8, 4 * H), lambda l, idx: (l, 0, 0)),  # packed small params
        pl.BlockSpec((1, H, 3 * H), lambda l, idx: (l, 0, 0)),  # wqkv
        pl.BlockSpec((1, H, H), lambda l, idx: (l, 0, 0)),      # wo
        pl.BlockSpec((1, H, 4 * H), lambda l, idx: (l, 0, 0)),  # wfc
        pl.BlockSpec((1, 4 * H, H), lambda l, idx: (l, 0, 0)),  # wproj
    ],
    out_specs=pl.BlockSpec((1, 1), lambda l, idx: (0, 0)),
    scratch_shapes=[pltpu.VMEM((S, H), jnp.float32)],
)

_FUSED_FWD = pl.pallas_call(
    fused_forward_kernel,
    out_shape=jax.ShapeDtypeStruct((1, 1), jnp.float32),
    grid_spec=_GRID_SPEC,
    compiler_params=pltpu.CompilerParams(dimension_semantics=("arbitrary",)),
)


@jax.jit
def model_forward(params, input_ids, labels, key_ids):
    # input_ids, labels: (1, S) int32; key_ids: (1, K) int32  (per-device batch = 1)
    ids = input_ids[0].astype(jnp.int32)
    # NOTE: the original nonzero()[0][0] raises if '<rep>' is missing; argmax
    # silently returns 0 instead -- caller must guarantee the token is present.
    idx = jnp.argmax(ids == REP_TOKEN_ID).astype(jnp.int32).reshape(1)
    # HF GPT2LMHeadModel shift: logits[:, :-1] vs labels[:, 1:]
    shifted = jnp.concatenate([labels[0, 1:].astype(jnp.int32),
                               jnp.full((1,), -100, jnp.int32)])
    loss = _FUSED_FWD(
        idx,
        ids.reshape(S, 1), shifted.reshape(S, 1),
        key_ids[0].astype(jnp.int32).reshape(K, 1),
        params['wte'], params['wpe'], params['lnf'], params['bow_w'],
        params['small'], params['wqkv'], params['wo'], params['wfc'], params['wproj'],
    )
    return {'loss': loss[0, 0]}


# ----------------------------- pure-JAX reference ------------------------------
def _ref_ln(x, g, b):
    mu = jnp.mean(x, -1, keepdims=True)
    var = jnp.mean((x - mu) ** 2, -1, keepdims=True)
    return (x - mu) / jnp.sqrt(var + LN_EPS) * g + b


def ref_forward(params, input_ids, labels, key_ids):
    ids = input_ids[0]
    h = params['wte'][ids] + params['wpe'][:S]
    causal = jnp.tril(jnp.ones((S, S), bool))
    for l in range(L):
        x = _ref_ln(h, params['ln1g'][l], params['ln1b'][l])
        qkv = x @ params['wqkv'][l] + params['bqkv'][l]
        q, k, v = qkv[:, :H], qkv[:, H:2 * H], qkv[:, 2 * H:]
        outs = []
        for hh in range(NH):
            qh = q[:, hh * DH:(hh + 1) * DH]
            kh = k[:, hh * DH:(hh + 1) * DH]
            vh = v[:, hh * DH:(hh + 1) * DH]
            sc = (qh @ kh.T) / jnp.sqrt(float(DH))
            sc = jnp.where(causal, sc, NEG_INF)
            outs.append(jax.nn.softmax(sc, axis=-1) @ vh)
        h = h + jnp.concatenate(outs, axis=-1) @ params['wo'][l] + params['bo'][l]
        x2 = _ref_ln(h, params['ln2g'][l], params['ln2b'][l])
        z = x2 @ params['wfc'][l] + params['bfc'][l]
        g = 0.5 * z * (1.0 + jnp.tanh(0.7978845608028654 * (z + 0.044715 * z ** 3)))
        h = h + g @ params['wproj'][l] + params['bproj'][l]
    hf = _ref_ln(h, params['lnf_g'], params['lnf_b'])
    logits = hf @ params['wte'].T
    logp = jax.nn.log_softmax(logits, axis=-1)
    shifted = jnp.concatenate([labels[0, 1:], jnp.full((1,), -100, jnp.int32)])
    valid = (shifted != -100).astype(jnp.float32)
    tgt = jnp.where(shifted != -100, shifted, 0)
    nll = -jnp.take_along_axis(logp, tgt[:, None], axis=-1)[:, 0]
    lm_loss = jnp.sum(nll * valid) / jnp.maximum(jnp.sum(valid), 1.0)
    idx = jnp.argmax(ids == REP_TOKEN_ID)
    blogp = jax.nn.log_softmax(hf[idx] @ params['bow_w'].T)
    bids = key_ids[0]
    bvalid = (bids != -100).astype(jnp.float32)
    btgt = jnp.where(bids != -100, bids, 0)
    bnll = -blogp[btgt]
    bow_loss = jnp.sum(bnll * bvalid) / jnp.maximum(jnp.sum(bvalid), 1.0)
    return BOW_WT * bow_loss + lm_loss


# ----------------------------- deterministic init ------------------------------
def init_params(key):
    def nrm(k, shape, std=0.02):
        return jax.random.normal(k, shape, jnp.float32) * std

    keys = jax.random.split(key, 10)
    p = {
        'wte': nrm(keys[0], (V, H)),
        'wpe': nrm(keys[1], (S, H), std=0.01),
        'bow_w': nrm(keys[2], (V, H)),       # torch.nn.Linear(H, V, bias=False).weight
        'lnf_g': jnp.ones((H,), jnp.float32),
        'lnf_b': jnp.zeros((H,), jnp.float32),
        'ln1g': jnp.ones((L, H), jnp.float32), 'ln1b': jnp.zeros((L, H), jnp.float32),
        'ln2g': jnp.ones((L, H), jnp.float32), 'ln2b': jnp.zeros((L, H), jnp.float32),
        'wqkv': nrm(keys[3], (L, H, 3 * H)), 'bqkv': nrm(keys[4], (L, 3 * H), std=0.01),
        'wo': nrm(keys[5], (L, H, H)), 'bo': jnp.zeros((L, H), jnp.float32),
        'wfc': nrm(keys[6], (L, H, 4 * H)), 'bfc': nrm(keys[7], (L, 4 * H), std=0.01),
        'wproj': nrm(keys[8], (L, 4 * H, H)), 'bproj': jnp.zeros((L, H), jnp.float32),
    }
    # Packed ln_f gain/bias -> (2, H)
    p['lnf'] = jnp.stack([p['lnf_g'], p['lnf_b']], axis=0)
    # Coalesce tiny per-layer params into one (L, 8, 4H) array (1 DMA per layer).
    def pad_row(x):
        return jnp.pad(x, ((0, 0), (0, 4 * H - x.shape[-1])))[:, None, :]
    p['small'] = jnp.concatenate(
        [pad_row(p['ln1g']), pad_row(p['ln1b']), pad_row(p['ln2g']), pad_row(p['ln2b']),
         pad_row(p['bo']), pad_row(p['bproj']), pad_row(p['bqkv']), pad_row(p['bfc'])],
        axis=1)                                                      # (L, 8, 4H)
    return p


# ----------------------------------- main ---------------------------------------
if __name__ == "__main__":
    root = jax.random.PRNGKey(0)
    k_par, k_ids, k_key = jax.random.split(root, 3)

    params = init_params(k_par)

    input_ids = jax.random.randint(k_ids, (1, S), 0, V - 1, jnp.int32)
    input_ids = input_ids.at[0, 3].set(REP_TOKEN_ID)           # first '<rep>' at position 3
    labels = input_ids.at[0, 0].set(-100).at[0, 1].set(-100)   # mask prompt tokens
    key_ids = jax.random.randint(k_key, (1, K), 0, V, jnp.int32)
    key_ids = key_ids.at[0, K - 1].set(-100)                   # exercise ignore_index

    out = model_forward(params, input_ids, labels, key_ids)
    loss = jax.block_until_ready(out['loss'])

    ref = jax.block_until_ready(ref_forward(params, input_ids, labels, key_ids))
    if not np.allclose(np.asarray(loss), np.asarray(ref), rtol=1e-2, atol=1e-2):
        raise AssertionError(f"Pallas loss {loss} != reference {ref}")

    print("KERNEL_OK")
</pallas_src>

<mosaic_0001>
module attributes {stable_mosaic.version = 11 : i64} {
  func.func @fused_forward_kernel(%arg0: i32, %arg1: memref<1xi32, #tpu.memory_space<smem>>, %arg2: memref<8x1xi32, #tpu.memory_space<vmem>>, %arg3: memref<8x1xi32, #tpu.memory_space<vmem>>, %arg4: memref<8x1xi32, #tpu.memory_space<vmem>>, %arg5: memref<128x128xf32, #tpu.memory_space<vmem>>, %arg6: memref<8x128xf32, #tpu.memory_space<vmem>>, %arg7: memref<2x128xf32, #tpu.memory_space<vmem>>, %arg8: memref<128x128xf32, #tpu.memory_space<vmem>>, %arg9: memref<1x8x512xf32, #tpu.memory_space<vmem>>, %arg10: memref<1x128x384xf32, #tpu.memory_space<vmem>>, %arg11: memref<1x128x128xf32, #tpu.memory_space<vmem>>, %arg12: memref<1x128x512xf32, #tpu.memory_space<vmem>>, %arg13: memref<1x512x128xf32, #tpu.memory_space<vmem>>, %arg14: memref<1x1xf32, #tpu.memory_space<vmem>>, %arg15: memref<8x128xf32, #tpu.memory_space<vmem>>) attributes {dimension_semantics = [#tpu.dimension_semantics<arbitrary>], iteration_bounds = array<i64: 2>, scalar_prefetch = 1 : i64, scratch_operands = 1 : i64, tpu.core_type = #tpu.core_type<tc>, window_params = [{pipeline_mode = #tpu.pipeline_mode<synchronous>, transform_indices = @transform_0, window_bounds = array<i64: 8, 1>}, {pipeline_mode = #tpu.pipeline_mode<synchronous>, transform_indices = @transform_1, window_bounds = array<i64: 8, 1>}, {pipeline_mode = #tpu.pipeline_mode<synchronous>, transform_indices = @transform_2, window_bounds = array<i64: 8, 1>}, {pipeline_mode = #tpu.pipeline_mode<synchronous>, transform_indices = @transform_3, window_bounds = array<i64: 128, 128>}, {pipeline_mode = #tpu.pipeline_mode<synchronous>, transform_indices = @transform_4, window_bounds = array<i64: 8, 128>}, {pipeline_mode = #tpu.pipeline_mode<synchronous>, transform_indices = @transform_5, window_bounds = array<i64: 2, 128>}, {pipeline_mode = #tpu.pipeline_mode<synchronous>, transform_indices = @transform_6, window_bounds = array<i64: 128, 128>}, {transform_indices = @transform_7, window_bounds = array<i64: 1, 8, 512>}, {transform_indices = @transform_8, window_bounds = array<i64: 1, 128, 384>}, {transform_indices = @transform_9, window_bounds = array<i64: 1, 128, 128>}, {transform_indices = @transform_10, window_bounds = array<i64: 1, 128, 512>}, {transform_indices = @transform_11, window_bounds = array<i64: 1, 512, 128>}, {pipeline_mode = #tpu.pipeline_mode<synchronous>, transform_indices = @transform_12, window_bounds = array<i64: 1, 1>}]} {
    %c0_i32 = arith.constant 0 : i32
    %0 = arith.cmpi eq, %arg0, %c0_i32 : i32
    %1 = arith.extui %0 : i1 to i32
    %c0_i32_0 = arith.constant 0 : i32
    %2 = arith.cmpi ne, %1, %c0_i32_0 : i32
    scf.if %2 {
      %c0_59 = arith.constant 0 : index
      %c0_60 = arith.constant 0 : index
      %182 = vector.load %arg2[%c0_59, %c0_60] : memref<8x1xi32, #tpu.memory_space<vmem>>, vector<8x1xi32>
      %183 = tpu.iota {dimensions = array<i32: 1>} : vector<8x128xi32>
      %184 = vector.broadcast %182 : vector<8x1xi32> to vector<8x128xi32>
      %185 = arith.cmpi eq, %183, %184 : vector<8x128xi32>
      %186 = arith.extui %185 : vector<8x128xi1> to vector<8x128xi32>
      %187 = arith.sitofp %186 : vector<8x128xi32> to vector<8x128xf32>
      %c0_61 = arith.constant 0 : index
      %c0_62 = arith.constant 0 : index
      %188 = vector.load %arg5[%c0_61, %c0_62] : memref<128x128xf32, #tpu.memory_space<vmem>>, vector<128x128xf32>
      %cst_63 = arith.constant dense<0.000000e+00> : vector<8x128xf32>
      %189 = tpu.matmul %187, %188, %cst_63 {dimension_numbers = #tpu.dot_dimension_numbers<[1], [0], [0], [1], [0, 0, 1, 1], [], []>} : vector<8x128xf32>, vector<128x128xf32>, vector<8x128xf32> -> vector<8x128xf32>
      %c0_64 = arith.constant 0 : index
      %c0_65 = arith.constant 0 : index
      %190 = vector.load %arg6[%c0_64, %c0_65] : memref<8x128xf32, #tpu.memory_space<vmem>>, vector<8x128xf32>
      %191 = arith.addf %189, %190 : vector<8x128xf32>
      %c0_66 = arith.constant 0 : index
      %c0_67 = arith.constant 0 : index
      %192 = vector.load %arg15[%c0_66, %c0_67] : memref<8x128xf32, #tpu.memory_space<vmem>>, vector<8x128xf32>
      tpu.vector_store %arg15[%c0_66, %c0_67], %191 {strides = array<i32>} : memref<8x128xf32, #tpu.memory_space<vmem>>, vector<8x128xf32>,
      %cst_68 = arith.constant 0.000000e+00 : f32
      %193 = vector.broadcast %cst_68 : f32 to vector<1x1xf32>
      %c0_69 = arith.constant 0 : index
      %c0_70 = arith.constant 0 : index
      %194 = vector.load %arg14[%c0_69, %c0_70] : memref<1x1xf32, #tpu.memory_space<vmem>>, vector<1x1xf32>
      tpu.vector_store %arg14[%c0_69, %c0_70], %193 {strides = array<i32>} : memref<1x1xf32, #tpu.memory_space<vmem>>, vector<1x1xf32>,
    } else {
    }
    %c0 = arith.constant 0 : index
    %c0_1 = arith.constant 0 : index
    %c0_2 = arith.constant 0 : index
    %3 = vector.load %arg9[%c0, %c0_1, %c0_2] : memref<1x8x512xf32, #tpu.memory_space<vmem>>, vector<1x8x512xf32>
    %4 = vector.shape_cast %3 : vector<1x8x512xf32> to vector<8x512xf32>
    %5 = vector.extract_strided_slice %4 {offsets = [0, 0], sizes = [1, 128], strides = [1, 1]} : vector<8x512xf32> to vector<1x128xf32>
    %6 = vector.extract_strided_slice %4 {offsets = [1, 0], sizes = [1, 128], strides = [1, 1]} : vector<8x512xf32> to vector<1x128xf32>
    %7 = vector.extract_strided_slice %4 {offsets = [2, 0], sizes = [1, 128], strides = [1, 1]} : vector<8x512xf32> to vector<1x128xf32>
    %8 = vector.extract_strided_slice %4 {offsets = [3, 0], sizes = [1, 128], strides = [1, 1]} : vector<8x512xf32> to vector<1x128xf32>
    %9 = vector.extract_strided_slice %4 {offsets = [4, 0], sizes = [1, 128], strides = [1, 1]} : vector<8x512xf32> to vector<1x128xf32>
    %10 = vector.extract_strided_slice %4 {offsets = [5, 0], sizes = [1, 128], strides = [1, 1]} : vector<8x512xf32> to vector<1x128xf32>
    %11 = vector.extract_strided_slice %4 {offsets = [6, 0], sizes = [1, 384], strides = [1, 1]} : vector<8x512xf32> to vector<1x384xf32>
    %12 = vector.extract_strided_slice %4 {offsets = [7, 0], sizes = [1, 512], strides = [1, 1]} : vector<8x512xf32> to vector<1x512xf32>
    %c0_3 = arith.constant 0 : index
    %c0_4 = arith.constant 0 : index
    %13 = vector.load %arg15[%c0_3, %c0_4] : memref<8x128xf32, #tpu.memory_space<vmem>>, vector<8x128xf32>
    %cst = arith.constant dense<0.000000e+00> : vector<8xf32>
    %14 = vector.multi_reduction <add>, %13, %cst [1] : vector<8x128xf32> to vector<8xf32>
    %15 = vector.shape_cast %14 : vector<8xf32> to vector<8x1xf32>
    %cst_5 = arith.constant 1.280000e+02 : f32
    %16 = vector.broadcast %cst_5 : f32 to vector<8x1xf32>
    %17 = arith.divf %15, %16 : vector<8x1xf32>
    %18 = vector.broadcast %17 : vector<8x1xf32> to vector<8x128xf32>
    %19 = arith.subf %13, %18 : vector<8x128xf32>
    %20 = arith.mulf %19, %19 : vector<8x128xf32>
    %cst_6 = arith.constant dense<0.000000e+00> : vector<8xf32>
    %21 = vector.multi_reduction <add>, %20, %cst_6 [1] : vector<8x128xf32> to vector<8xf32>
    %22 = vector.shape_cast %21 : vector<8xf32> to vector<8x1xf32>
    %cst_7 = arith.constant 1.280000e+02 : f32
    %23 = vector.broadcast %cst_7 : f32 to vector<8x1xf32>
    %24 = arith.divf %22, %23 : vector<8x1xf32>
    %25 = vector.broadcast %17 : vector<8x1xf32> to vector<8x128xf32>
    %26 = arith.subf %13, %25 : vector<8x128xf32>
    %cst_8 = arith.constant 9.99999974E-6 : f32
    %27 = vector.broadcast %cst_8 : f32 to vector<8x1xf32>
    %28 = arith.addf %24, %27 : vector<8x1xf32>
    %29 = math.rsqrt %28 : vector<8x1xf32>
    %30 = vector.broadcast %29 : vector<8x1xf32> to vector<8x128xf32>
    %31 = arith.mulf %26, %30 : vector<8x128xf32>
    %32 = vector.broadcast %5 : vector<1x128xf32> to vector<8x128xf32>
    %33 = arith.mulf %31, %32 : vector<8x128xf32>
    %34 = vector.broadcast %6 : vector<1x128xf32> to vector<8x128xf32>
    %35 = arith.addf %33, %34 : vector<8x128xf32>
    %c0_9 = arith.constant 0 : index
    %c0_10 = arith.constant 0 : index
    %c0_11 = arith.constant 0 : index
    %36 = vector.load %arg10[%c0_9, %c0_10, %c0_11] : memref<1x128x384xf32, #tpu.memory_space<vmem>>, vector<1x128x384xf32>
    %37 = vector.shape_cast %36 : vector<1x128x384xf32> to vector<128x384xf32>
    %cst_12 = arith.constant dense<0.000000e+00> : vector<8x384xf32>
    %38 = tpu.matmul %35, %37, %cst_12 {dimension_numbers = #tpu.dot_dimension_numbers<[1], [0], [0], [1], [0, 0, 1, 1], [], []>} : vector<8x128xf32>, vector<128x384xf32>, vector<8x384xf32> -> vector<8x384xf32>
    %39 = vector.broadcast %11 : vector<1x384xf32> to vector<8x384xf32>
    %40 = arith.addf %38, %39 : vector<8x384xf32>
    %41 = vector.extract_strided_slice %40 {offsets = [0, 0], sizes = [8, 128], strides = [1, 1]} : vector<8x384xf32> to vector<8x128xf32>
    %42 = vector.extract_strided_slice %40 {offsets = [0, 128], sizes = [8, 128], strides = [1, 1]} : vector<8x384xf32> to vector<8x128xf32>
    %43 = vector.extract_strided_slice %40 {offsets = [0, 256], sizes = [8, 128], strides = [1, 1]} : vector<8x384xf32> to vector<8x128xf32>
    %44 = tpu.iota {dimensions = array<i32: 0>} : vector<8x8xi32>
    %45 = tpu.iota {dimensions = array<i32: 1>} : vector<8x8xi32>
    %46 = arith.cmpi sle, %45, %44 : vector<8x8xi32>
    %cst_13 = arith.constant 3.200000e+01 : f32
    %47 = math.sqrt %cst_13 : f32
    %cst_14 = arith.constant 1.000000e+00 : f32
    %48 = arith.divf %cst_14, %47 : f32
    %49 = vector.extract_strided_slice %41 {offsets = [0, 0], sizes = [8, 32], strides = [1, 1]} : vector<8x128xf32> to vector<8x32xf32>
    %50 = vector.extract_strided_slice %42 {offsets = [0, 0], sizes = [8, 32], strides = [1, 1]} : vector<8x128xf32> to vector<8x32xf32>
    %51 = vector.extract_strided_slice %43 {offsets = [0, 0], sizes = [8, 32], strides = [1, 1]} : vector<8x128xf32> to vector<8x32xf32>
    %cst_15 = arith.constant dense<0.000000e+00> : vector<8x8xf32>
    %52 = tpu.matmul %49, %50, %cst_15 {dimension_numbers = #tpu.dot_dimension_numbers<[1], [1], [0], [0], [0, 0, 1, 0], [], []>} : vector<8x32xf32>, vector<8x32xf32>, vector<8x8xf32> -> vector<8x8xf32>
    %53 = vector.broadcast %48 : f32 to vector<8x8xf32>
    %54 = arith.mulf %52, %53 : vector<8x8xf32>
    %cst_16 = arith.constant -1.000000e+30 : f32
    %55 = vector.broadcast %cst_16 : f32 to vector<8x8xf32>
    %56 = arith.select %46, %54, %55 : vector<8x8xi1>, vector<8x8xf32>
    %cst_17 = arith.constant dense<0xFF800000> : vector<8xf32>
    %57 = vector.multi_reduction <maximumf>, %56, %cst_17 [1] : vector<8x8xf32> to vector<8xf32>
    %58 = vector.shape_cast %57 : vector<8xf32> to vector<8x1xf32>
    %59 = vector.broadcast %58 : vector<8x1xf32> to vector<8x8xf32>
    %60 = arith.subf %56, %59 : vector<8x8xf32>
    %61 = math.exp %60 : vector<8x8xf32>
    %cst_18 = arith.constant dense<0.000000e+00> : vector<8xf32>
    %62 = vector.multi_reduction <add>, %61, %cst_18 [1] : vector<8x8xf32> to vector<8xf32>
    %63 = vector.shape_cast %62 : vector<8xf32> to vector<8x1xf32>
    %64 = tpu.reciprocal %63 {approx = true} : vector<8x1xf32> -> vector<8x1xf32>
    %65 = vector.broadcast %64 : vector<8x1xf32> to vector<8x8xf32>
    %66 = arith.mulf %61, %65 : vector<8x8xf32>
    %cst_19 = arith.constant dense<0.000000e+00> : vector<8x32xf32>
    %67 = tpu.matmul %66, %51, %cst_19 {dimension_numbers = #tpu.dot_dimension_numbers<[1], [0], [0], [1], [0, 0, 1, 1], [], []>} : vector<8x8xf32>, vector<8x32xf32>, vector<8x32xf32> -> vector<8x32xf32>
    %68 = vector.extract_strided_slice %41 {offsets = [0, 32], sizes = [8, 32], strides = [1, 1]} : vector<8x128xf32> to vector<8x32xf32>
    %69 = vector.extract_strided_slice %42 {offsets = [0, 32], sizes = [8, 32], strides = [1, 1]} : vector<8x128xf32> to vector<8x32xf32>
    %70 = vector.extract_strided_slice %43 {offsets = [0, 32], sizes = [8, 32], strides = [1, 1]} : vector<8x128xf32> to vector<8x32xf32>
    %cst_20 = arith.constant dense<0.000000e+00> : vector<8x8xf32>
    %71 = tpu.matmul %68, %69, %cst_20 {dimension_numbers = #tpu.dot_dimension_numbers<[1], [1], [0], [0], [0, 0, 1, 0], [], []>} : vector<8x32xf32>, vector<8x32xf32>, vector<8x8xf32> -> vector<8x8xf32>
    %72 = vector.broadcast %48 : f32 to vector<8x8xf32>
    %73 = arith.mulf %71, %72 : vector<8x8xf32>
    %cst_21 = arith.constant -1.000000e+30 : f32
    %74 = vector.broadcast %cst_21 : f32 to vector<8x8xf32>
    %75 = arith.select %46, %73, %74 : vector<8x8xi1>, vector<8x8xf32>
    %cst_22 = arith.constant dense<0xFF800000> : vector<8xf32>
    %76 = vector.multi_reduction <maximumf>, %75, %cst_22 [1] : vector<8x8xf32> to vector<8xf32>
    %77 = vector.shape_cast %76 : vector<8xf32> to vector<8x1xf32>
    %78 = vector.broadcast %77 : vector<8x1xf32> to vector<8x8xf32>
    %79 = arith.subf %75, %78 : vector<8x8xf32>
    %80 = math.exp %79 : vector<8x8xf32>
    %cst_23 = arith.constant dense<0.000000e+00> : vector<8xf32>
    %81 = vector.multi_reduction <add>, %80, %cst_23 [1] : vector<8x8xf32> to vector<8xf32>
    %82 = vector.shape_cast %81 : vector<8xf32> to vector<8x1xf32>
    %83 = tpu.reciprocal %82 {approx = true} : vector<8x1xf32> -> vector<8x1xf32>
    %84 = vector.broadcast %83 : vector<8x1xf32> to vector<8x8xf32>
    %85 = arith.mulf %80, %84 : vector<8x8xf32>
    %cst_24 = arith.constant dense<0.000000e+00> : vector<8x32xf32>
    %86 = tpu.matmul %85, %70, %cst_24 {dimension_numbers = #tpu.dot_dimension_numbers<[1], [0], [0], [1], [0, 0, 1, 1], [], []>} : vector<8x8xf32>, vector<8x32xf32>, vector<8x32xf32> -> vector<8x32xf32>
    %87 = vector.extract_strided_slice %41 {offsets = [0, 64], sizes = [8, 32], strides = [1, 1]} : vector<8x128xf32> to vector<8x32xf32>
    %88 = vector.extract_strided_slice %42 {offsets = [0, 64], sizes = [8, 32], strides = [1, 1]} : vector<8x128xf32> to vector<8x32xf32>
    %89 = vector.extract_strided_slice %43 {offsets = [0, 64], sizes = [8, 32], strides = [1, 1]} : vector<8x128xf32> to vector<8x32xf32>
    %cst_25 = arith.constant dense<0.000000e+00> : vector<8x8xf32>
    %90 = tpu.matmul %87, %88, %cst_25 {dimension_numbers = #tpu.dot_dimension_numbers<[1], [1], [0], [0], [0, 0, 1, 0], [], []>} : vector<8x32xf32>, vector<8x32xf32>, vector<8x8xf32> -> vector<8x8xf32>
    %91 = vector.broadcast %48 : f32 to vector<8x8xf32>
    %92 = arith.mulf %90, %91 : vector<8x8xf32>
    %cst_26 = arith.constant -1.000000e+30 : f32
    %93 = vector.broadcast %cst_26 : f32 to vector<8x8xf32>
    %94 = arith.select %46, %92, %93 : vector<8x8xi1>, vector<8x8xf32>
    %cst_27 = arith.constant dense<0xFF800000> : vector<8xf32>
    %95 = vector.multi_reduction <maximumf>, %94, %cst_27 [1] : vector<8x8xf32> to vector<8xf32>
    %96 = vector.shape_cast %95 : vector<8xf32> to vector<8x1xf32>
    %97 = vector.broadcast %96 : vector<8x1xf32> to vector<8x8xf32>
    %98 = arith.subf %94, %97 : vector<8x8xf32>
    %99 = math.exp %98 : vector<8x8xf32>
    %cst_28 = arith.constant dense<0.000000e+00> : vector<8xf32>
    %100 = vector.multi_reduction <add>, %99, %cst_28 [1] : vector<8x8xf32> to vector<8xf32>
    %101 = vector.shape_cast %100 : vector<8xf32> to vector<8x1xf32>
    %102 = tpu.reciprocal %101 {approx = true} : vector<8x1xf32> -> vector<8x1xf32>
    %103 = vector.broadcast %102 : vector<8x1xf32> to vector<8x8xf32>
    %104 = arith.mulf %99, %103 : vector<8x8xf32>
    %cst_29 = arith.constant dense<0.000000e+00> : vector<8x32xf32>
    %105 = tpu.matmul %104, %89, %cst_29 {dimension_numbers = #tpu.dot_dimension_numbers<[1], [0], [0], [1], [0, 0, 1, 1], [], []>} : vector<8x8xf32>, vector<8x32xf32>, vector<8x32xf32> -> vector<8x32xf32>
    %106 = vector.extract_strided_slice %41 {offsets = [0, 96], sizes = [8, 32], strides = [1, 1]} : vector<8x128xf32> to vector<8x32xf32>
    %107 = vector.extract_strided_slice %42 {offsets = [0, 96], sizes = [8, 32], strides = [1, 1]} : vector<8x128xf32> to vector<8x32xf32>
    %108 = vector.extract_strided_slice %43 {offsets = [0, 96], sizes = [8, 32], strides = [1, 1]} : vector<8x128xf32> to vector<8x32xf32>
    %cst_30 = arith.constant dense<0.000000e+00> : vector<8x8xf32>
    %109 = tpu.matmul %106, %107, %cst_30 {dimension_numbers = #tpu.dot_dimension_numbers<[1], [1], [0], [0], [0, 0, 1, 0], [], []>} : vector<8x32xf32>, vector<8x32xf32>, vector<8x8xf32> -> vector<8x8xf32>
    %110 = vector.broadcast %48 : f32 to vector<8x8xf32>
    %111 = arith.mulf %109, %110 : vector<8x8xf32>
    %cst_31 = arith.constant -1.000000e+30 : f32
    %112 = vector.broadcast %cst_31 : f32 to vector<8x8xf32>
    %113 = arith.select %46, %111, %112 : vector<8x8xi1>, vector<8x8xf32>
    %cst_32 = arith.constant dense<0xFF800000> : vector<8xf32>
    %114 = vector.multi_reduction <maximumf>, %113, %cst_32 [1] : vector<8x8xf32> to vector<8xf32>
    %115 = vector.shape_cast %114 : vector<8xf32> to vector<8x1xf32>
    %116 = vector.broadcast %115 : vector<8x1xf32> to vector<8x8xf32>
    %117 = arith.subf %113, %116 : vector<8x8xf32>
    %118 = math.exp %117 : vector<8x8xf32>
    %cst_33 = arith.constant dense<0.000000e+00> : vector<8xf32>
    %119 = vector.multi_reduction <add>, %118, %cst_33 [1] : vector<8x8xf32> to vector<8xf32>
    %120 = vector.shape_cast %119 : vector<8xf32> to vector<8x1xf32>
    %121 = tpu.reciprocal %120 {approx = true} : vector<8x1xf32> -> vector<8x1xf32>
    %122 = vector.broadcast %121 : vector<8x1xf32> to vector<8x8xf32>
    %123 = arith.mulf %118, %122 : vector<8x8xf32>
    %cst_34 = arith.constant dense<0.000000e+00> : vector<8x32xf32>
    %124 = tpu.matmul %123, %108, %cst_34 {dimension_numbers = #tpu.dot_dimension_numbers<[1], [0], [0], [1], [0, 0, 1, 1], [], []>} : vector<8x8xf32>, vector<8x32xf32>, vector<8x32xf32> -> vector<8x32xf32>
    %125 = tpu.concatenate %67, %86, %105, %124 in 1 : vector<8x32xf32>, vector<8x32xf32>, vector<8x32xf32>, vector<8x32xf32> -> vector<8x128xf32>
    %c0_35 = arith.constant 0 : index
    %c0_36 = arith.constant 0 : index
    %c0_37 = arith.constant 0 : index
    %126 = vector.load %arg11[%c0_35, %c0_36, %c0_37] : memref<1x128x128xf32, #tpu.memory_space<vmem>>, vector<1x128x128xf32>
    %127 = vector.shape_cast %126 : vector<1x128x128xf32> to vector<128x128xf32>
    %cst_38 = arith.constant dense<0.000000e+00> : vector<8x128xf32>
    %128 = tpu.matmul %125, %127, %cst_38 {dimension_numbers = #tpu.dot_dimension_numbers<[1], [0], [0], [1], [0, 0, 1, 1], [], []>} : vector<8x128xf32>, vector<128x128xf32>, vector<8x128xf32> -> vector<8x128xf32>
    %129 = arith.addf %13, %128 : vector<8x128xf32>
    %130 = vector.broadcast %9 : vector<1x128xf32> to vector<8x128xf32>
    %131 = arith.addf %129, %130 : vector<8x128xf32>
    %cst_39 = arith.constant dense<0.000000e+00> : vector<8xf32>
    %132 = vector.multi_reduction <add>, %131, %cst_39 [1] : vector<8x128xf32> to vector<8xf32>
    %133 = vector.shape_cast %132 : vector<8xf32> to vector<8x1xf32>
    %cst_40 = arith.constant 1.280000e+02 : f32
    %134 = vector.broadcast %cst_40 : f32 to vector<8x1xf32>
    %135 = arith.divf %133, %134 : vector<8x1xf32>
    %136 = vector.broadcast %135 : vector<8x1xf32> to vector<8x128xf32>
    %137 = arith.subf %131, %136 : vector<8x128xf32>
    %138 = arith.mulf %137, %137 : vector<8x128xf32>
    %cst_41 = arith.constant dense<0.000000e+00> : vector<8xf32>
    %139 = vector.multi_reduction <add>, %138, %cst_41 [1] : vector<8x128xf32> to vector<8xf32>
    %140 = vector.shape_cast %139 : vector<8xf32> to vector<8x1xf32>
    %cst_42 = arith.constant 1.280000e+02 : f32
    %141 = vector.broadcast %cst_42 : f32 to vector<8x1xf32>
    %142 = arith.divf %140, %141 : vector<8x1xf32>
    %143 = vector.broadcast %135 : vector<8x1xf32> to vector<8x128xf32>
    %144 = arith.subf %131, %143 : vector<8x128xf32>
    %cst_43 = arith.constant 9.99999974E-6 : f32
    %145 = vector.broadcast %cst_43 : f32 to vector<8x1xf32>
    %146 = arith.addf %142, %145 : vector<8x1xf32>
    %147 = math.rsqrt %146 : vector<8x1xf32>
    %148 = vector.broadcast %147 : vector<8x1xf32> to vector<8x128xf32>
    %149 = arith.mulf %144, %148 : vector<8x128xf32>
    %150 = vector.broadcast %7 : vector<1x128xf32> to vector<8x128xf32>
    %151 = arith.mulf %149, %150 : vector<8x128xf32>
    %152 = vector.broadcast %8 : vector<1x128xf32> to vector<8x128xf32>
    %153 = arith.addf %151, %152 : vector<8x128xf32>
    %c0_44 = arith.constant 0 : index
    %c0_45 = arith.constant 0 : index
    %c0_46 = arith.constant 0 : index
    %154 = vector.load %arg12[%c0_44, %c0_45, %c0_46] : memref<1x128x512xf32, #tpu.memory_space<vmem>>, vector<1x128x512xf32>
    %155 = vector.shape_cast %154 : vector<1x128x512xf32> to vector<128x512xf32>
    %cst_47 = arith.constant dense<0.000000e+00> : vector<8x512xf32>
    %156 = tpu.matmul %153, %155, %cst_47 {dimension_numbers = #tpu.dot_dimension_numbers<[1], [0], [0], [1], [0, 0, 1, 1], [], []>} : vector<8x128xf32>, vector<128x512xf32>, vector<8x512xf32> -> vector<8x512xf32>
    %157 = vector.broadcast %12 : vector<1x512xf32> to vector<8x512xf32>
    %158 = arith.addf %156, %157 : vector<8x512xf32>
    %cst_48 = arith.constant 5.000000e-01 : f32
    %159 = vector.broadcast %cst_48 : f32 to vector<8x512xf32>
    %160 = arith.mulf %159, %158 : vector<8x512xf32>
    %cst_49 = arith.constant 4.471500e-02 : f32
    %161 = vector.broadcast %cst_49 : f32 to vector<8x512xf32>
    %162 = arith.mulf %161, %158 : vector<8x512xf32>
    %163 = arith.mulf %162, %158 : vector<8x512xf32>
    %164 = arith.mulf %163, %158 : vector<8x512xf32>
    %165 = arith.addf %158, %164 : vector<8x512xf32>
    %cst_50 = arith.constant 0.797884583 : f32
    %166 = vector.broadcast %cst_50 : f32 to vector<8x512xf32>
    %167 = arith.mulf %166, %165 : vector<8x512xf32>
    %168 = math.tanh %167 : vector<8x512xf32>
    %cst_51 = arith.constant 1.000000e+00 : f32
    %169 = vector.broadcast %cst_51 : f32 to vector<8x512xf32>
    %170 = arith.addf %169, %168 : vector<8x512xf32>
    %171 = arith.mulf %160, %170 : vector<8x512xf32>
    %c0_52 = arith.constant 0 : index
    %c0_53 = arith.constant 0 : index
    %c0_54 = arith.constant 0 : index
    %172 = vector.load %arg13[%c0_52, %c0_53, %c0_54] : memref<1x512x128xf32, #tpu.memory_space<vmem>>, vector<1x512x128xf32>
    %173 = vector.shape_cast %172 : vector<1x512x128xf32> to vector<512x128xf32>
    %cst_55 = arith.constant dense<0.000000e+00> : vector<8x128xf32>
    %174 = tpu.matmul %171, %173, %cst_55 {dimension_numbers = #tpu.dot_dimension_numbers<[1], [0], [0], [1], [0, 0, 1, 1], [], []>} : vector<8x512xf32>, vector<512x128xf32>, vector<8x128xf32> -> vector<8x128xf32>
    %175 = arith.addf %131, %174 : vector<8x128xf32>
    %176 = vector.broadcast %10 : vector<1x128xf32> to vector<8x128xf32>
    %177 = arith.addf %175, %176 : vector<8x128xf32>
    %c0_56 = arith.constant 0 : index
    %c0_57 = arith.constant 0 : index
    %178 = vector.load %arg15[%c0_56, %c0_57] : memref<8x128xf32, #tpu.memory_space<vmem>>, vector<8x128xf32>
    tpu.vector_store %arg15[%c0_56, %c0_57], %177 {strides = array<i32>} : memref<8x128xf32, #tpu.memory_space<vmem>>, vector<8x128xf32>,
    %c1_i32 = arith.constant 1 : i32
    %179 = arith.cmpi eq, %arg0, %c1_i32 : i32
    %180 = arith.extui %179 : i1 to i32
    %c0_i32_58 = arith.constant 0 : i32
    %181 = arith.cmpi ne, %180, %c0_i32_58 : i32
    scf.if %181 {
      %c0_59 = arith.constant 0 : index
      %c0_60 = arith.constant 0 : index
      %182 = vector.load %arg7[%c0_59, %c0_60] : memref<2x128xf32, #tpu.memory_space<vmem>>, vector<1x128xf32>
      %c1 = arith.constant 1 : index
      %c0_61 = arith.constant 0 : index
      %183 = vector.load %arg7[%c1, %c0_61] : memref<2x128xf32, #tpu.memory_space<vmem>>, vector<1x128xf32>
      %cst_62 = arith.constant dense<0.000000e+00> : vector<8xf32>
      %184 = vector.multi_reduction <add>, %177, %cst_62 [1] : vector<8x128xf32> to vector<8xf32>
      %185 = vector.shape_cast %184 : vector<8xf32> to vector<8x1xf32>
      %cst_63 = arith.constant 1.280000e+02 : f32
      %186 = vector.broadcast %cst_63 : f32 to vector<8x1xf32>
      %187 = arith.divf %185, %186 : vector<8x1xf32>
      %188 = vector.broadcast %187 : vector<8x1xf32> to vector<8x128xf32>
      %189 = arith.subf %177, %188 : vector<8x128xf32>
      %190 = arith.mulf %189, %189 : vector<8x128xf32>
      %cst_64 = arith.constant dense<0.000000e+00> : vector<8xf32>
      %191 = vector.multi_reduction <add>, %190, %cst_64 [1] : vector<8x128xf32> to vector<8xf32>
      %192 = vector.shape_cast %191 : vector<8xf32> to vector<8x1xf32>
      %cst_65 = arith.constant 1.280000e+02 : f32
      %193 = vector.broadcast %cst_65 : f32 to vector<8x1xf32>
      %194 = arith.divf %192, %193 : vector<8x1xf32>
      %195 = vector.broadcast %187 : vector<8x1xf32> to vector<8x128xf32>
      %196 = arith.subf %177, %195 : vector<8x128xf32>
      %cst_66 = arith.constant 9.99999974E-6 : f32
      %197 = vector.broadcast %cst_66 : f32 to vector<8x1xf32>
      %198 = arith.addf %194, %197 : vector<8x1xf32>
      %199 = math.rsqrt %198 : vector<8x1xf32>
      %200 = vector.broadcast %199 : vector<8x1xf32> to vector<8x128xf32>
      %201 = arith.mulf %196, %200 : vector<8x128xf32>
      %202 = vector.broadcast %182 : vector<1x128xf32> to vector<8x128xf32>
      %203 = arith.mulf %201, %202 : vector<8x128xf32>
      %204 = vector.broadcast %183 : vector<1x128xf32> to vector<8x128xf32>
      %205 = arith.addf %203, %204 : vector<8x128xf32>
      %c0_67 = arith.constant 0 : index
      %c0_68 = arith.constant 0 : index
      %206 = vector.load %arg5[%c0_67, %c0_68] : memref<128x128xf32, #tpu.memory_space<vmem>>, vector<128x128xf32>
      %cst_69 = arith.constant dense<0.000000e+00> : vector<8x128xf32>
      %207 = tpu.matmul %205, %206, %cst_69 {dimension_numbers = #tpu.dot_dimension_numbers<[1], [1], [0], [0], [0, 0, 1, 0], [], []>} : vector<8x128xf32>, vector<128x128xf32>, vector<8x128xf32> -> vector<8x128xf32>
      %cst_70 = arith.constant dense<0xFF800000> : vector<8xf32>
      %208 = vector.multi_reduction <maximumf>, %207, %cst_70 [1] : vector<8x128xf32> to vector<8xf32>
      %209 = vector.shape_cast %208 : vector<8xf32> to vector<8x1xf32>
      %210 = vector.broadcast %209 : vector<8x1xf32> to vector<8x128xf32>
      %211 = arith.subf %207, %210 : vector<8x128xf32>
      %212 = math.exp %211 : vector<8x128xf32>
      %cst_71 = arith.constant dense<0.000000e+00> : vector<8xf32>
      %213 = vector.multi_reduction <add>, %212, %cst_71 [1] : vector<8x128xf32> to vector<8xf32>
      %214 = vector.shape_cast %213 : vector<8xf32> to vector<8x1xf32>
      %215 = math.log %214 : vector<8x1xf32>
      %216 = arith.addf %209, %215 : vector<8x1xf32>
      %217 = vector.broadcast %216 : vector<8x1xf32> to vector<8x128xf32>
      %218 = arith.subf %207, %217 : vector<8x128xf32>
      %c0_72 = arith.constant 0 : index
      %c0_73 = arith.constant 0 : index
      %219 = vector.load %arg3[%c0_72, %c0_73] : memref<8x1xi32, #tpu.memory_space<vmem>>, vector<8x1xi32>
      %220 = tpu.iota {dimensions = array<i32: 1>} : vector<8x128xi32>
      %221 = vector.broadcast %219 : vector<8x1xi32> to vector<8x128xi32>
      %222 = arith.cmpi eq, %220, %221 : vector<8x128xi32>
      %223 = arith.extui %222 : vector<8x128xi1> to vector<8x128xi32>
      %224 = arith.sitofp %223 : vector<8x128xi32> to vector<8x128xf32>
      %c-100_i32 = arith.constant -100 : i32
      %225 = vector.broadcast %c-100_i32 : i32 to vector<8x1xi32>
      %226 = arith.cmpi ne, %219, %225 : vector<8x1xi32>
      %227 = arith.extui %226 : vector<8x1xi1> to vector<8x1xi32>
      %228 = arith.sitofp %227 : vector<8x1xi32> to vector<8x1xf32>
      %229 = arith.mulf %224, %218 : vector<8x128xf32>
      %cst_74 = arith.constant dense<0.000000e+00> : vector<8xf32>
      %230 = vector.multi_reduction <add>, %229, %cst_74 [1] : vector<8x128xf32> to vector<8xf32>
      %231 = vector.shape_cast %230 : vector<8xf32> to vector<8x1xf32>
      %cst_75 = arith.constant 0.000000e+00 : f32
      %232 = vector.broadcast %cst_75 : f32 to vector<8x1xf32>
      %233 = arith.subf %232, %231 : vector<8x1xf32>
      %234 = arith.mulf %233, %228 : vector<8x1xf32>
      %cst_76 = arith.constant dense<0.000000e+00> : vector<1xf32>
      %235 = vector.multi_reduction <add>, %234, %cst_76 [0] : vector<8x1xf32> to vector<1xf32>
      %236 = vector.shape_cast %235 : vector<1xf32> to vector<1x1xf32>
      %cst_77 = arith.constant dense<0.000000e+00> : vector<1xf32>
      %237 = vector.multi_reduction <add>, %228, %cst_77 [0] : vector<8x1xf32> to vector<1xf32>
      %238 = vector.shape_cast %237 : vector<1xf32> to vector<1x1xf32>
      %cst_78 = arith.constant 1.000000e+00 : f32
      %239 = vector.broadcast %cst_78 : f32 to vector<1x1xf32>
      %240 = arith.maximumf %238, %239 : vector<1x1xf32>
      %241 = arith.divf %236, %240 : vector<1x1xf32>
      %c0_79 = arith.constant 0 : index
      %242 = memref.load %arg1[%c0_79] : memref<1xi32, #tpu.memory_space<smem>>
      %243 = arith.index_cast %242 : i32 to index
      %c0_80 = arith.constant 0 : index
      %244 = vector.load %arg15[%243, %c0_80] : memref<8x128xf32, #tpu.memory_space<vmem>>, vector<1x128xf32>
      %cst_81 = arith.constant dense<0.000000e+00> : vector<1xf32>
      %245 = vector.multi_reduction <add>, %244, %cst_81 [1] : vector<1x128xf32> to vector<1xf32>
      %246 = vector.shape_cast %245 : vector<1xf32> to vector<1x1xf32>
      %cst_82 = arith.constant 1.280000e+02 : f32
      %247 = vector.broadcast %cst_82 : f32 to vector<1x1xf32>
      %248 = arith.divf %246, %247 : vector<1x1xf32>
      %249 = vector.broadcast %248 : vector<1x1xf32> to vector<1x128xf32>
      %250 = arith.subf %244, %249 : vector<1x128xf32>
      %251 = arith.mulf %250, %250 : vector<1x128xf32>
      %cst_83 = arith.constant dense<0.000000e+00> : vector<1xf32>
      %252 = vector.multi_reduction <add>, %251, %cst_83 [1] : vector<1x128xf32> to vector<1xf32>
      %253 = vector.shape_cast %252 : vector<1xf32> to vector<1x1xf32>
      %cst_84 = arith.constant 1.280000e+02 : f32
      %254 = vector.broadcast %cst_84 : f32 to vector<1x1xf32>
      %255 = arith.divf %253, %254 : vector<1x1xf32>
      %256 = vector.broadcast %248 : vector<1x1xf32> to vector<1x128xf32>
      %257 = arith.subf %244, %256 : vector<1x128xf32>
      %cst_85 = arith.constant 9.99999974E-6 : f32
      %258 = vector.broadcast %cst_85 : f32 to vector<1x1xf32>
      %259 = arith.addf %255, %258 : vector<1x1xf32>
      %260 = math.rsqrt %259 : vector<1x1xf32>
      %261 = vector.broadcast %260 : vector<1x1xf32> to vector<1x128xf32>
      %262 = arith.mulf %257, %261 : vector<1x128xf32>
      %263 = arith.mulf %262, %182 : vector<1x128xf32>
      %264 = arith.addf %263, %183 : vector<1x128xf32>
      %c0_86 = arith.constant 0 : index
      %c0_87 = arith.constant 0 : index
      %265 = vector.load %arg8[%c0_86, %c0_87] : memref<128x128xf32, #tpu.memory_space<vmem>>, vector<128x128xf32>
      %cst_88 = arith.constant dense<0.000000e+00> : vector<1x128xf32>
      %266 = tpu.matmul %264, %265, %cst_88 {dimension_numbers = #tpu.dot_dimension_numbers<[1], [1], [0], [0], [0, 0, 1, 0], [], []>} : vector<1x128xf32>, vector<128x128xf32>, vector<1x128xf32> -> vector<1x128xf32>
      %cst_89 = arith.constant dense<0xFF800000> : vector<1xf32>
      %267 = vector.multi_reduction <maximumf>, %266, %cst_89 [1] : vector<1x128xf32> to vector<1xf32>
      %268 = vector.shape_cast %267 : vector<1xf32> to vector<1x1xf32>
      %269 = vector.broadcast %268 : vector<1x1xf32> to vector<1x128xf32>
      %270 = arith.subf %266, %269 : vector<1x128xf32>
      %271 = math.exp %270 : vector<1x128xf32>
      %cst_90 = arith.constant dense<0.000000e+00> : vector<1xf32>
      %272 = vector.multi_reduction <add>, %271, %cst_90 [1] : vector<1x128xf32> to vector<1xf32>
      %273 = vector.shape_cast %272 : vector<1xf32> to vector<1x1xf32>
      %274 = math.log %273 : vector<1x1xf32>
      %275 = arith.addf %268, %274 : vector<1x1xf32>
      %276 = vector.broadcast %275 : vector<1x1xf32> to vector<1x128xf32>
      %277 = arith.subf %266, %276 : vector<1x128xf32>
      %c0_91 = arith.constant 0 : index
      %c0_92 = arith.constant 0 : index
      %278 = vector.load %arg4[%c0_91, %c0_92] : memref<8x1xi32, #tpu.memory_space<vmem>>, vector<8x1xi32>
      %279 = tpu.iota {dimensions = array<i32: 1>} : vector<8x128xi32>
      %280 = vector.broadcast %278 : vector<8x1xi32> to vector<8x128xi32>
      %281 = arith.cmpi eq, %279, %280 : vector<8x128xi32>
      %282 = arith.extui %281 : vector<8x128xi1> to vector<8x128xi32>
      %283 = arith.sitofp %282 : vector<8x128xi32> to vector<8x128xf32>
      %c-100_i32_93 = arith.constant -100 : i32
      %284 = vector.broadcast %c-100_i32_93 : i32 to vector<8x1xi32>
      %285 = arith.cmpi ne, %278, %284 : vector<8x1xi32>
      %286 = arith.extui %285 : vector<8x1xi1> to vector<8x1xi32>
      %287 = arith.sitofp %286 : vector<8x1xi32> to vector<8x1xf32>
      %288 = vector.broadcast %277 : vector<1x128xf32> to vector<8x128xf32>
      %289 = arith.mulf %283, %288 : vector<8x128xf32>
      %cst_94 = arith.constant dense<0.000000e+00> : vector<8xf32>
      %290 = vector.multi_reduction <add>, %289, %cst_94 [1] : vector<8x128xf32> to vector<8xf32>
      %291 = vector.shape_cast %290 : vector<8xf32> to vector<8x1xf32>
      %cst_95 = arith.constant 0.000000e+00 : f32
      %292 = vector.broadcast %cst_95 : f32 to vector<8x1xf32>
      %293 = arith.subf %292, %291 : vector<8x1xf32>
      %294 = arith.mulf %293, %287 : vector<8x1xf32>
      %cst_96 = arith.constant dense<0.000000e+00> : vector<1xf32>
      %295 = vector.multi_reduction <add>, %294, %cst_96 [0] : vector<8x1xf32> to vector<1xf32>
      %296 = vector.shape_cast %295 : vector<1xf32> to vector<1x1xf32>
      %cst_97 = arith.constant dense<0.000000e+00> : vector<1xf32>
      %297 = vector.multi_reduction <add>, %287, %cst_97 [0] : vector<8x1xf32> to vector<1xf32>
      %298 = vector.shape_cast %297 : vector<1xf32> to vector<1x1xf32>
      %cst_98 = arith.constant 1.000000e+00 : f32
      %299 = vector.broadcast %cst_98 : f32 to vector<1x1xf32>
      %300 = arith.maximumf %298, %299 : vector<1x1xf32>
      %301 = arith.divf %296, %300 : vector<1x1xf32>
      %cst_99 = arith.constant 5.000000e-01 : f32
      %302 = vector.broadcast %cst_99 : f32 to vector<1x1xf32>
      %303 = arith.mulf %302, %301 : vector<1x1xf32>
      %304 = arith.addf %303, %241 : vector<1x1xf32>
      %c0_100 = arith.constant 0 : index
      %c0_101 = arith.constant 0 : index
      %305 = vector.load %arg14[%c0_100, %c0_101] : memref<1x1xf32, #tpu.memory_space<vmem>>, vector<1x1xf32>
      tpu.vector_store %arg14[%c0_100, %c0_101], %304 {strides = array<i32>} : memref<1x1xf32, #tpu.memory_space<vmem>>, vector<1x1xf32>,
    } else {
    }
    return
  }
  func.func @transform_0(%arg0: i32, %arg1: memref<1xi32, #tpu.memory_space<smem>>) -> (i32, i32) {
    %c0_i32 = arith.constant 0 : i32
    %c0_i32_0 = arith.constant 0 : i32
    %c0_i32_1 = arith.constant 0 : i32
    return %c0_i32, %c0_i32_0 : i32, i32
  }
  func.func @transform_1(%arg0: i32, %arg1: memref<1xi32, #tpu.memory_space<smem>>) -> (i32, i32) {
    %c0_i32 = arith.constant 0 : i32
    %c0_i32_0 = arith.constant 0 : i32
    %c0_i32_1 = arith.constant 0 : i32
    return %c0_i32, %c0_i32_0 : i32, i32
  }
  func.func @transform_2(%arg0: i32, %arg1: memref<1xi32, #tpu.memory_space<smem>>) -> (i32, i32) {
    %c0_i32 = arith.constant 0 : i32
    %c0_i32_0 = arith.constant 0 : i32
    %c0_i32_1 = arith.constant 0 : i32
    return %c0_i32, %c0_i32_0 : i32, i32
  }
  func.func @transform_3(%arg0: i32, %arg1: memref<1xi32, #tpu.memory_space<smem>>) -> (i32, i32) {
    %c0_i32 = arith.constant 0 : i32
    %c0_i32_0 = arith.constant 0 : i32
    %c0_i32_1 = arith.constant 0 : i32
    return %c0_i32, %c0_i32_0 : i32, i32
  }
  func.func @transform_4(%arg0: i32, %arg1: memref<1xi32, #tpu.memory_space<smem>>) -> (i32, i32) {
    %c0_i32 = arith.constant 0 : i32
    %c0_i32_0 = arith.constant 0 : i32
    %c0_i32_1 = arith.constant 0 : i32
    return %c0_i32, %c0_i32_0 : i32, i32
  }
  func.func @transform_5(%arg0: i32, %arg1: memref<1xi32, #tpu.memory_space<smem>>) -> (i32, i32) {
    %c0_i32 = arith.constant 0 : i32
    %c0_i32_0 = arith.constant 0 : i32
    %c0_i32_1 = arith.constant 0 : i32
    return %c0_i32, %c0_i32_0 : i32, i32
  }
  func.func @transform_6(%arg0: i32, %arg1: memref<1xi32, #tpu.memory_space<smem>>) -> (i32, i32) {
    %c0_i32 = arith.constant 0 : i32
    %c0_i32_0 = arith.constant 0 : i32
    %c0_i32_1 = arith.constant 0 : i32
    return %c0_i32, %c0_i32_0 : i32, i32
  }
  func.func @transform_7(%arg0: i32, %arg1: memref<1xi32, #tpu.memory_space<smem>>) -> (i32, i32, i32) {
    %c0_i32 = arith.constant 0 : i32
    %c0_i32_0 = arith.constant 0 : i32
    %c0_i32_1 = arith.constant 0 : i32
    return %arg0, %c0_i32, %c0_i32_0 : i32, i32, i32
  }
  func.func @transform_8(%arg0: i32, %arg1: memref<1xi32, #tpu.memory_space<smem>>) -> (i32, i32, i32) {
    %c0_i32 = arith.constant 0 : i32
    %c0_i32_0 = arith.constant 0 : i32
    %c0_i32_1 = arith.constant 0 : i32
    return %arg0, %c0_i32, %c0_i32_0 : i32, i32, i32
  }
  func.func @transform_9(%arg0: i32, %arg1: memref<1xi32, #tpu.memory_space<smem>>) -> (i32, i32, i32) {
    %c0_i32 = arith.constant 0 : i32
    %c0_i32_0 = arith.constant 0 : i32
    %c0_i32_1 = arith.constant 0 : i32
    return %arg0, %c0_i32, %c0_i32_0 : i32, i32, i32
  }
  func.func @transform_10(%arg0: i32, %arg1: memref<1xi32, #tpu.memory_space<smem>>) -> (i32, i32, i32) {
    %c0_i32 = arith.constant 0 : i32
    %c0_i32_0 = arith.constant 0 : i32
    %c0_i32_1 = arith.constant 0 : i32
    return %arg0, %c0_i32, %c0_i32_0 : i32, i32, i32
  }
  func.func @transform_11(%arg0: i32, %arg1: memref<1xi32, #tpu.memory_space<smem>>) -> (i32, i32, i32) {
    %c0_i32 = arith.constant 0 : i32
    %c0_i32_0 = arith.constant 0 : i32
    %c0_i32_1 = arith.constant 0 : i32
    return %arg0, %c0_i32, %c0_i32_0 : i32, i32, i32
  }
  func.func @transform_12(%arg0: i32, %arg1: memref<1xi32, #tpu.memory_space<smem>>) -> (i32, i32) {
    %c0_i32 = arith.constant 0 : i32
    %c0_i32_0 = arith.constant 0 : i32
    %c0_i32_1 = arith.constant 0 : i32
    return %c0_i32, %c0_i32_0 : i32, i32
  }
}

</mosaic_0001>

<llo_original>
// kernel: model_forward.1
$region0: #{model_forward.1}
  #allocation0 [shape = 'u32[]', space=smem, size = 0x4, offset = 0x4, fixed_abs, tag = 'smem constant byte address 0x4 - core index']
  #allocation1 [shape = 'u32[72,128]{1,0:T(1,128)}', space=vmem, size = 0x9000, scoped, tag = 'internal scratch']
  #allocation2 [shape = 'f32[8,128]{1,0:T(8,128)}', space=vmem, size = 0x1000, scoped, tag = 'scratch operand']
  #allocation3 [shape = 's32[1]{0}', space=sflag, size = 0x4, scoped, tag = 'scoped memory for model_forward.1']
  #allocation4 [shape = 's32[1]{0:T(128)S(6)}', space=smem, size = 0x200, scoped, tag = 'prefetched SMEM operand 0']
  %s0 = inlined_call_operand.<no memory space> [shape: s32[1], index: 0, kind: input, shape index: {}]
  %s1 = inlined_call_operand.vmem [shape: s32[8,1], index: 1, kind: input, shape index: {}]
  %s2 = inlined_call_operand.vmem [shape: s32[8,1], index: 2, kind: input, shape index: {}]
  %s3 = inlined_call_operand.vmem [shape: s32[8,1], index: 3, kind: input, shape index: {}]
  %s4 = inlined_call_operand.hbm [shape: f32[128,128], index: 4, kind: input, shape index: {}]
  %s5 = inlined_call_operand.vmem [shape: f32[8,128], index: 5, kind: input, shape index: {}]
  %s6 = inlined_call_operand.vmem [shape: f32[2,128], index: 6, kind: input, shape index: {}]
  %s7 = inlined_call_operand.hbm [shape: f32[128,128], index: 7, kind: input, shape index: {}]
  %s8 = inlined_call_operand.hbm [shape: f32[2,8,512], index: 8, kind: input, shape index: {}]
  %s9 = inlined_call_operand.hbm [shape: f32[2,128,384], index: 9, kind: input, shape index: {}]
  %s10 = inlined_call_operand.hbm [shape: f32[2,128,128], index: 10, kind: input, shape index: {}]
  %s11 = inlined_call_operand.hbm [shape: f32[2,128,512], index: 11, kind: input, shape index: {}]
  %s12 = inlined_call_operand.hbm [shape: f32[2,512,128], index: 12, kind: input, shape index: {}]
  %s13 = inlined_call_operand.hbm [shape: f32[1,1], index: 13, kind: output, shape index: {}]
  %s14 = sld [smem:[#allocation0]]
  $region117: #{model_forward.1} parent=0
    _
  %s16 = ssub.s32 1, %s14
  %s17 = scalar_select 0, %s16, %s14
  %18 = sst [smem:[#allocation4]] %s0
  $region1: #{model_forward.1} parent=0
    #allocation5 [shape = 'u8[65536]{0}', space=vmem, size = 0x10000, scoped, tag = 'input window, operand 4, single buffered']
    #allocation6 [shape = 's32[2]{0}', space=sflag, size = 0x8, scoped, tag = 'scoped memory for model_forward.1']
    #allocation7 [shape = 's32[2]{0}', space=sflag, size = 0x8, scoped, tag = 'scoped memory for model_forward.1']
    #allocation8 [shape = 'u8[65536]{0}', space=vmem, size = 0x10000, scoped, tag = 'input window, operand 7, single buffered']
    #allocation9 [shape = 's32[1]{0}', space=sflag, size = 0x4, scoped, tag = 'scoped memory for model_forward.1']
    #allocation10 [shape = 'u8[32768]{0}', space=vmem, size = 0x8000, scoped, tag = 'input window, operand 8']
    #allocation11 [shape = 'u8[393216]{0}', space=vmem, size = 0x60000, scoped, tag = 'input window, operand 9']
    #allocation12 [shape = 'u8[131072]{0}', space=vmem, size = 0x20000, scoped, tag = 'input window, operand 10']
    #allocation13 [shape = 'u8[524288]{0}', space=vmem, size = 0x80000, scoped, tag = 'input window, operand 11']
    #allocation14 [shape = 'u8[524288]{0}', space=vmem, size = 0x80000, scoped, tag = 'input window, operand 12']
    #allocation15 [shape = 'u8[512]{0}', space=vmem, size = 0x400, scoped, tag = 'output window, operand 0, single buffered']
    %19 = vsyncpa [#allocation6], 0
    %20 = vsyncpa [#allocation9], 0
    %21 = vsyncpa [#allocation7], 0
    loop: start=0, step=1, limit=4
    $region2: #{model_forward.1} parent=1 // loop_pre_header
      _
    $region3: #{model_forward.1} parent=1 // loop_header
      %s23 = sphi 0, %s27
      %p24 = scmp.ge.s32.totalorder %s23, 4
      %s31 = sphi 0, %s31
      %s33 = sphi 0, %s31
      %s34 = sphi 0, %s33
      %s48 = sphi 0, %s34
      %s52 = sphi 0, %s52
      %s54 = sphi 0, %s52
      %s55 = sphi 0, %s54
      %s69 = sphi 0, %s55
      %s73 = sphi 0, %s73
      %s75 = sphi 0, %s73
      %s76 = sphi 0, %s75
      %s90 = sphi 0, %s76
      %s94 = sphi 0, %s94
      %s96 = sphi 0, %s94
      %s97 = sphi 0, %s96
      %s111 = sphi 0, %s97
      %s115 = sphi 0, %s115
      %s117 = sphi 0, %s115
      %s118 = sphi 0, %s117
      %s132 = sphi 0, %s118
      %s136 = sphi 0, %s136
      %s138 = sphi 0, %s136
      %s139 = sphi 0, %s138
      %s153 = sphi 0, %s139
      %s157 = sphi 0, %s157
      %s159 = sphi 0, %s157
      %s160 = sphi 0, %s159
      %s174 = sphi 0, %s160
      %s180 = sphi 0, %s182
      %s183 = sphi 0, %s180
      %s184 = sphi 0, %s183
      %s200 = sphi 0, %s184
      %s206 = sphi 0, %s208
      %s209 = sphi 0, %s206
      %s210 = sphi 0, %s209
      %s226 = sphi 0, %s210
      %s232 = sphi 0, %s234
      %s235 = sphi 0, %s232
      %s236 = sphi 0, %s235
      %s252 = sphi 0, %s236
      %s258 = sphi 0, %s260
      %s261 = sphi 0, %s258
      %s262 = sphi 0, %s261
      %s278 = sphi 0, %s262
      %s284 = sphi 0, %s286
      %s287 = sphi 0, %s284
      %s288 = sphi 0, %s287
      %s304 = sphi 0, %s288
      %s308 = sphi 0, %s308
      %s310 = sphi 0, %s308
      %s311 = sphi 0, %s310
      %s325 = sphi 0, %s311
    $region4: #{model_forward.1} parent=1 // loop_header_branch
      %26 = sbr.rel (%p24) target = $region8
    $region5: #{model_forward.1} parent=1 // loop_body
      %s28 = ssub.s32 %s23, 1
      %s29 = ssub.s32 %s23, 2
      %s30 = sadd.s32 %s23, 1
      %s32 = sadd.s32 %s31, 1
      %p35 = scmp.eq.s32.totalorder %s23, 1
      %p36 = scmp.ne.s32.totalorder %s31, %s33
      %p37 = scmp.eq.s32.totalorder %s23, 0
      %p38 = por %p36, %p37
      %p39 = scmp.ne.s32.totalorder %s31, %s33
      %p40 = scmp.eq.s32.totalorder %s28, 1
      %p41 = por %p39, %p40
      %p42 = scmp.ne.s32.totalorder %s33, %s34
      %p43 = scmp.eq.s32.totalorder %s28, 0
      %p44 = por %p42, %p43
      %p45 = scmp.ne.s32.totalorder %s33, %s34
      %p46 = scmp.eq.s32.totalorder %s29, 1
      %p47 = por %p45, %p46
      %p49 = scmp.ne.s32.totalorder %s34, %s48
      %p50 = scmp.eq.s32.totalorder %s29, 0
      %p51 = por %p49, %p50
      %s53 = sadd.s32 %s52, 1
      %p56 = scmp.eq.s32.totalorder %s23, 1
      %p57 = scmp.ne.s32.totalorder %s52, %s54
      %p58 = scmp.eq.s32.totalorder %s23, 0
      %p59 = por %p57, %p58
      %p60 = scmp.ne.s32.totalorder %s52, %s54
      %p61 = scmp.eq.s32.totalorder %s28, 1
      %p62 = por %p60, %p61
      %p63 = scmp.ne.s32.totalorder %s54, %s55
      %p64 = scmp.eq.s32.totalorder %s28, 0
      %p65 = por %p63, %p64
      %p66 = scmp.ne.s32.totalorder %s54, %s55
      %p67 = scmp.eq.s32.totalorder %s29, 1
      %p68 = por %p66, %p67
      %p70 = scmp.ne.s32.totalorder %s55, %s69
      %p71 = scmp.eq.s32.totalorder %s29, 0
      %p72 = por %p70, %p71
      %s74 = sadd.s32 %s73, 1
      %p77 = scmp.eq.s32.totalorder %s23, 1
      %p78 = scmp.ne.s32.totalorder %s73, %s75
      %p79 = scmp.eq.s32.totalorder %s23, 0
      %p80 = por %p78, %p79
      %p81 = scmp.ne.s32.totalorder %s73, %s75
      %p82 = scmp.eq.s32.totalorder %s28, 1
      %p83 = por %p81, %p82
      %p84 = scmp.ne.s32.totalorder %s75, %s76
      %p85 = scmp.eq.s32.totalorder %s28, 0
      %p86 = por %p84, %p85
      %p87 = scmp.ne.s32.totalorder %s75, %s76
      %p88 = scmp.eq.s32.totalorder %s29, 1
      %p89 = por %p87, %p88
      %p91 = scmp.ne.s32.totalorder %s76, %s90
      %p92 = scmp.eq.s32.totalorder %s29, 0
      %p93 = por %p91, %p92
      %s95 = sadd.s32 %s94, 1
      %p98 = scmp.eq.s32.totalorder %s23, 1
      %p99 = scmp.ne.s32.totalorder %s94, %s96
      %p100 = scmp.eq.s32.totalorder %s23, 0
      %p101 = por %p99, %p100
      %p102 = scmp.ne.s32.totalorder %s94, %s96
      %p103 = scmp.eq.s32.totalorder %s28, 1
      %p104 = por %p102, %p103
      %p105 = scmp.ne.s32.totalorder %s96, %s97
      %p106 = scmp.eq.s32.totalorder %s28, 0
      %p107 = por %p105, %p106
      %p108 = scmp.ne.s32.totalorder %s96, %s97
      %p109 = scmp.eq.s32.totalorder %s29, 1
      %p110 = por %p108, %p109
      %p112 = scmp.ne.s32.totalorder %s97, %s111
      %p113 = scmp.eq.s32.totalorder %s29, 0
      %p114 = por %p112, %p113
      %s116 = sadd.s32 %s115, 1
      %p119 = scmp.eq.s32.totalorder %s23, 1
      %p120 = scmp.ne.s32.totalorder %s115, %s117
      %p121 = scmp.eq.s32.totalorder %s23, 0
      %p122 = por %p120, %p121
      %p123 = scmp.ne.s32.totalorder %s115, %s117
      %p124 = scmp.eq.s32.totalorder %s28, 1
      %p125 = por %p123, %p124
      %p126 = scmp.ne.s32.totalorder %s117, %s118
      %p127 = scmp.eq.s32.totalorder %s28, 0
      %p128 = por %p126, %p127
      %p129 = scmp.ne.s32.totalorder %s117, %s118
      %p130 = scmp.eq.s32.totalorder %s29, 1
      %p131 = por %p129, %p130
      %p133 = scmp.ne.s32.totalorder %s118, %s132
      %p134 = scmp.eq.s32.totalorder %s29, 0
      %p135 = por %p133, %p134
      %s137 = sadd.s32 %s136, 1
      %p140 = scmp.eq.s32.totalorder %s23, 1
      %p141 = scmp.ne.s32.totalorder %s136, %s138
      %p142 = scmp.eq.s32.totalorder %s23, 0
      %p143 = por %p141, %p142
      %p144 = scmp.ne.s32.totalorder %s136, %s138
      %p145 = scmp.eq.s32.totalorder %s28, 1
      %p146 = por %p144, %p145
      %p147 = scmp.ne.s32.totalorder %s138, %s139
      %p148 = scmp.eq.s32.totalorder %s28, 0
      %p149 = por %p147, %p148
      %p150 = scmp.ne.s32.totalorder %s138, %s139
      %p151 = scmp.eq.s32.totalorder %s29, 1
      %p152 = por %p150, %p151
      %p154 = scmp.ne.s32.totalorder %s139, %s153
      %p155 = scmp.eq.s32.totalorder %s29, 0
      %p156 = por %p154, %p155
      %s158 = sadd.s32 %s157, 1
      %p161 = scmp.eq.s32.totalorder %s23, 1
      %p162 = scmp.ne.s32.totalorder %s157, %s159
      %p163 = scmp.eq.s32.totalorder %s23, 0
      %p164 = por %p162, %p163
      %p165 = scmp.ne.s32.totalorder %s157, %s159
      %p166 = scmp.eq.s32.totalorder %s28, 1
      %p167 = por %p165, %p166
      %p168 = scmp.ne.s32.totalorder %s159, %s160
      %p169 = scmp.eq.s32.totalorder %s28, 0
      %p170 = por %p168, %p169
      %p171 = scmp.ne.s32.totalorder %s159, %s160
      %p172 = scmp.eq.s32.totalorder %s29, 1
      %p173 = por %p171, %p172
      %p175 = scmp.ne.s32.totalorder %s160, %s174
      %p176 = scmp.eq.s32.totalorder %s29, 0
      %p177 = por %p175, %p176
      %s178 = ssub.s32 %s23, %s30
      %p179 = scmp.eq.s32.totalorder %s178, 0
      %s181 = sadd.s32 %s180, 1
      %s182 = scalar_select %p179, %s180, %s181
      %p185 = pneg %p179
      %p186 = scmp.eq.s32.totalorder %s23, 1
      %p187 = por %p185, %p186
      %p188 = scmp.ne.s32.totalorder %s180, %s183
      %p189 = scmp.eq.s32.totalorder %s23, 0
      %p190 = por %p188, %p189
      %p191 = scmp.ne.s32.totalorder %s180, %s183
      %p192 = scmp.eq.s32.totalorder %s28, 1
      %p193 = por %p191, %p192
      %p194 = scmp.ne.s32.totalorder %s183, %s184
      %p195 = scmp.eq.s32.totalorder %s28, 0
      %p196 = por %p194, %p195
      %p197 = scmp.ne.s32.totalorder %s183, %s184
      %p198 = scmp.eq.s32.totalorder %s29, 1
      %p199 = por %p197, %p198
      %p201 = scmp.ne.s32.totalorder %s184, %s200
      %p202 = scmp.eq.s32.totalorder %s29, 0
      %p203 = por %p201, %p202
      %s204 = ssub.s32 %s23, %s30
      %p205 = scmp.eq.s32.totalorder %s204, 0
      %s207 = sadd.s32 %s206, 1
      %s208 = scalar_select %p205, %s206, %s207
      %p211 = pneg %p205
      %p212 = scmp.eq.s32.totalorder %s23, 1
      %p213 = por %p211, %p212
      %p214 = scmp.ne.s32.totalorder %s206, %s209
      %p215 = scmp.eq.s32.totalorder %s23, 0
      %p216 = por %p214, %p215
      %p217 = scmp.ne.s32.totalorder %s206, %s209
      %p218 = scmp.eq.s32.totalorder %s28, 1
      %p219 = por %p217, %p218
      %p220 = scmp.ne.s32.totalorder %s209, %s210
      %p221 = scmp.eq.s32.totalorder %s28, 0
      %p222 = por %p220, %p221
      %p223 = scmp.ne.s32.totalorder %s209, %s210
      %p224 = scmp.eq.s32.totalorder %s29, 1
      %p225 = por %p223, %p224
      %p227 = scmp.ne.s32.totalorder %s210, %s226
      %p228 = scmp.eq.s32.totalorder %s29, 0
      %p229 = por %p227, %p228
      %s230 = ssub.s32 %s23, %s30
      %p231 = scmp.eq.s32.totalorder %s230, 0
      %s233 = sadd.s32 %s232, 1
      %s234 = scalar_select %p231, %s232, %s233
      %p237 = pneg %p231
      %p238 = scmp.eq.s32.totalorder %s23, 1
      %p239 = por %p237, %p238
      %p240 = scmp.ne.s32.totalorder %s232, %s235
      %p241 = scmp.eq.s32.totalorder %s23, 0
      %p242 = por %p240, %p241
      %p243 = scmp.ne.s32.totalorder %s232, %s235
      %p244 = scmp.eq.s32.totalorder %s28, 1
      %p245 = por %p243, %p244
      %p246 = scmp.ne.s32.totalorder %s235, %s236
      %p247 = scmp.eq.s32.totalorder %s28, 0
      %p248 = por %p246, %p247
      %p249 = scmp.ne.s32.totalorder %s235, %s236
      %p250 = scmp.eq.s32.totalorder %s29, 1
      %p251 = por %p249, %p250
      %p253 = scmp.ne.s32.totalorder %s236, %s252
      %p254 = scmp.eq.s32.totalorder %s29, 0
      %p255 = por %p253, %p254
      %s256 = ssub.s32 %s23, %s30
      %p257 = scmp.eq.s32.totalorder %s256, 0
      %s259 = sadd.s32 %s258, 1
      %s260 = scalar_select %p257, %s258, %s259
      %p263 = pneg %p257
      %p264 = scmp.eq.s32.totalorder %s23, 1
      %p265 = por %p263, %p264
      %p266 = scmp.ne.s32.totalorder %s258, %s261
      %p267 = scmp.eq.s32.totalorder %s23, 0
      %p268 = por %p266, %p267
      %p269 = scmp.ne.s32.totalorder %s258, %s261
      %p270 = scmp.eq.s32.totalorder %s28, 1
      %p271 = por %p269, %p270
      %p272 = scmp.ne.s32.totalorder %s261, %s262
      %p273 = scmp.eq.s32.totalorder %s28, 0
      %p274 = por %p272, %p273
      %p275 = scmp.ne.s32.totalorder %s261, %s262
      %p276 = scmp.eq.s32.totalorder %s29, 1
      %p277 = por %p275, %p276
      %p279 = scmp.ne.s32.totalorder %s262, %s278
      %p280 = scmp.eq.s32.totalorder %s29, 0
      %p281 = por %p279, %p280
      %s282 = ssub.s32 %s23, %s30
      %p283 = scmp.eq.s32.totalorder %s282, 0
      %s285 = sadd.s32 %s284, 1
      %s286 = scalar_select %p283, %s284, %s285
      %p289 = pneg %p283
      %p290 = scmp.eq.s32.totalorder %s23, 1
      %p291 = por %p289, %p290
      %p292 = scmp.ne.s32.totalorder %s284, %s287
      %p293 = scmp.eq.s32.totalorder %s23, 0
      %p294 = por %p292, %p293
      %p295 = scmp.ne.s32.totalorder %s284, %s287
      %p296 = scmp.eq.s32.totalorder %s28, 1
      %p297 = por %p295, %p296
      %p298 = scmp.ne.s32.totalorder %s287, %s288
      %p299 = scmp.eq.s32.totalorder %s28, 0
      %p300 = por %p298, %p299
      %p301 = scmp.ne.s32.totalorder %s287, %s288
      %p302 = scmp.eq.s32.totalorder %s29, 1
      %p303 = por %p301, %p302
      %p305 = scmp.ne.s32.totalorder %s288, %s304
      %p306 = scmp.eq.s32.totalorder %s29, 0
      %p307 = por %p305, %p306
      %s309 = sadd.s32 %s308, 1
      %p312 = scmp.eq.s32.totalorder %s23, 1
      %p313 = scmp.ne.s32.totalorder %s308, %s310
      %p314 = scmp.eq.s32.totalorder %s23, 0
      %p315 = por %p313, %p314
      %p316 = scmp.ne.s32.totalorder %s308, %s310
      %p317 = scmp.eq.s32.totalorder %s28, 1
      %p318 = por %p316, %p317
      %p319 = scmp.ne.s32.totalorder %s310, %s311
      %p320 = scmp.eq.s32.totalorder %s28, 0
      %p321 = por %p319, %p320
      %p322 = scmp.ne.s32.totalorder %s310, %s311
      %p323 = scmp.eq.s32.totalorder %s29, 1
      %p324 = por %p322, %p323
      %p326 = scmp.ne.s32.totalorder %s311, %s325
      %p327 = scmp.eq.s32.totalorder %s29, 0
      %p328 = por %p326, %p327
      %p329 = scmp.le.s32.totalorder 1, %s23
      %p330 = scmp.lt.s32.totalorder %s23, 3
      %p331 = pnand %p329, %p330
      %p332 = pneg %p331
      // Predicated region
      $region9: #{model_forward.1} parent=5 // pred_check
        _
      $region10: #{model_forward.1} parent=5 // pred_check_branch
        %334 = sbr.rel (%p331) target = $region12
      $region11: #{model_forward.1} parent=5 // pred_region
        %s335 = ssub.s32 %s23, 1
        // Predicated region
        $region13: #{model_forward.1} parent=11 // pred_check
          %p336 = pneg %p44
        $region14: #{model_forward.1} parent=11 // pred_check_branch
          %338 = sbr.rel (%p336) target = $region16
        $region15: #{model_forward.1} parent=11 // pred_region
          _
        $region16: #{model_forward.1} parent=11 // pred_fallthru
          _
        // Predicated region
        $region17: #{model_forward.1} parent=11 // pred_check
          %p339 = pneg %p65
        $region18: #{model_forward.1} parent=11 // pred_check_branch
          %341 = sbr.rel (%p339) target = $region20
        $region19: #{model_forward.1} parent=11 // pred_region
          _
        $region20: #{model_forward.1} parent=11 // pred_fallthru
          _
        // Predicated region
        $region21: #{model_forward.1} parent=11 // pred_check
          %p342 = pneg %p86
        $region22: #{model_forward.1} parent=11 // pred_check_branch
          %344 = sbr.rel (%p342) target = $region24
        $region23: #{model_forward.1} parent=11 // pred_region
          _
        $region24: #{model_forward.1} parent=11 // pred_fallthru
          _
        // Predicated region
        $region25: #{model_forward.1} parent=11 // pred_check
          %p345 = pneg %p107
        $region26: #{model_forward.1} parent=11 // pred_check_branch
          %347 = sbr.rel (%p345) target = $region28
        $region27: #{model_forward.1} parent=11 // pred_region
          %349 = vsyncadd [#allocation6], 0
          %s350 = sshll.u32 %s4, 4
          %s351 = int_to_ptr.hbm [resolvable:$true] %s350
          %s352 = sshll.u32 [#allocation5], 4
          %s353 = int_to_ptr.vmem [resolvable:$true] %s352
          %358 = dma.hbm_to_vmem [thread:$0]  %s351, 2048, %s353, [#allocation6], 128, 128, 8
        $region28: #{model_forward.1} parent=11 // pred_fallthru
          _
        // Predicated region
        $region29: #{model_forward.1} parent=11 // pred_check
          %p359 = pneg %p128
        $region30: #{model_forward.1} parent=11 // pred_check_branch
          %361 = sbr.rel (%p359) target = $region32
        $region31: #{model_forward.1} parent=11 // pred_region
          _
        $region32: #{model_forward.1} parent=11 // pred_fallthru
          _
        // Predicated region
        $region33: #{model_forward.1} parent=11 // pred_check
          %p362 = pneg %p149
        $region34: #{model_forward.1} parent=11 // pred_check_branch
          %364 = sbr.rel (%p362) target = $region36
        $region35: #{model_forward.1} parent=11 // pred_region
          _
        $region36: #{model_forward.1} parent=11 // pred_fallthru
          _
        // Predicated region
        $region37: #{model_forward.1} parent=11 // pred_check
          %p365 = pneg %p170
        $region38: #{model_forward.1} parent=11 // pred_check_branch
          %367 = sbr.rel (%p365) target = $region40
        $region39: #{model_forward.1} parent=11 // pred_region
          %369 = vsyncadd [#allocation9], 0
          %s370 = sshll.u32 %s7, 4
          %s371 = int_to_ptr.hbm [resolvable:$true] %s370
          %s372 = sshll.u32 [#allocation8], 4
          %s373 = int_to_ptr.vmem [resolvable:$true] %s372
          %378 = dma.hbm_to_vmem [thread:$0]  %s371, 2048, %s373, [#allocation9], 128, 128, 8
        $region40: #{model_forward.1} parent=11 // pred_fallthru
          _
      $region12: #{model_forward.1} parent=5 // pred_fallthru
        _
      %p379 = scmp.lt.s32.totalorder %s23, 2
      // Predicated region
      $region41: #{model_forward.1} parent=5 // pred_check
        %p380 = pneg %p379
      $region42: #{model_forward.1} parent=5 // pred_check_branch
        %382 = sbr.rel (%p380) target = $region44
      $region43: #{model_forward.1} parent=5 // pred_region
        // Predicated region
        $region45: #{model_forward.1} parent=43 // pred_check
          %p383 = pneg %p190
        $region46: #{model_forward.1} parent=43 // pred_check_branch
          %385 = sbr.rel (%p383) target = $region48
        $region47: #{model_forward.1} parent=43 // pred_region
          %s386 = sand.u32 %s23, 1
          %s387 = scalar_lea.sflag [#allocation6], %s386
          %s388 = sand.u32 %s180, 1
          %s389 = smul.addr %s388, 32
          %s390 = scalar_lea.vmem [#allocation10], %s389
          %392 = vsyncadd %s387, 0
          %s393 = smul.addr %s23, 4
          %s394 = smul.addr %s393, 8
          %s395 = scalar_lea.hbm %s8, %s394
          %s397 = sshll.u32 %s395, 4
          %s398 = int_to_ptr.hbm [resolvable:$true] %s397
          %s399 = sshll.u32 %s390, 4
          %s400 = int_to_ptr.vmem [resolvable:$true] %s399
          %402 = dma.hbm_to_vmem [thread:$0]  %s398, 512, %s400, %s387
        $region48: #{model_forward.1} parent=43 // pred_fallthru
          _
        // Predicated region
        $region49: #{model_forward.1} parent=43 // pred_check
          %p403 = pneg %p216
        $region50: #{model_forward.1} parent=43 // pred_check_branch
          %405 = sbr.rel (%p403) target = $region52
        $region51: #{model_forward.1} parent=43 // pred_region
          %s406 = sand.u32 %s23, 1
          %s407 = scalar_lea.sflag [#allocation6], %s406
          %s408 = sand.u32 %s206, 1
          %s409 = smul.addr %s408, 384
          %s410 = scalar_lea.vmem [#allocation11], %s409
          %412 = vsyncadd %s407, 0
          %s413 = smul.addr %s23, 48
          %s414 = smul.addr %s413, 8
          %s415 = scalar_lea.hbm %s9, %s414
          %s416 = sshll.u32 %s415, 4
          %s417 = int_to_ptr.hbm [resolvable:$true] %s416
          %s418 = sshll.u32 %s410, 4
          %s419 = int_to_ptr.vmem [resolvable:$true] %s418
          %424 = dma.hbm_to_vmem [thread:$0]  %s417, 6144, %s419, %s407, 384, 384, 24
        $region52: #{model_forward.1} parent=43 // pred_fallthru
          _
        // Predicated region
        $region53: #{model_forward.1} parent=43 // pred_check
          %p425 = pneg %p242
        $region54: #{model_forward.1} parent=43 // pred_check_branch
          %427 = sbr.rel (%p425) target = $region56
        $region55: #{model_forward.1} parent=43 // pred_region
          %s428 = sand.u32 %s23, 1
          %s429 = scalar_lea.sflag [#allocation6], %s428
          %s430 = sand.u32 %s232, 1
          %s431 = smul.addr %s430, 128
          %s432 = scalar_lea.vmem [#allocation12], %s431
          %434 = vsyncadd %s429, 0
          %s435 = smul.addr %s23, 16
          %s436 = smul.addr %s435, 8
          %s437 = scalar_lea.hbm %s10, %s436
          %s438 = sshll.u32 %s437, 4
          %s439 = int_to_ptr.hbm [resolvable:$true] %s438
          %s440 = sshll.u32 %s432, 4
          %s441 = int_to_ptr.vmem [resolvable:$true] %s440
          %446 = dma.hbm_to_vmem [thread:$0]  %s439, 2048, %s441, %s429, 128, 128, 8
        $region56: #{model_forward.1} parent=43 // pred_fallthru
          _
        // Predicated region
        $region57: #{model_forward.1} parent=43 // pred_check
          %p447 = pneg %p268
        $region58: #{model_forward.1} parent=43 // pred_check_branch
          %449 = sbr.rel (%p447) target = $region60
        $region59: #{model_forward.1} parent=43 // pred_region
          %s450 = sand.u32 %s23, 1
          %s451 = scalar_lea.sflag [#allocation6], %s450
          %s452 = sand.u32 %s258, 1
          %s453 = smul.addr %s452, 512
          %s454 = scalar_lea.vmem [#allocation13], %s453
          %456 = vsyncadd %s451, 0
          %s457 = smul.addr %s23, 64
          %s458 = smul.addr %s457, 8
          %s459 = scalar_lea.hbm %s11, %s458
          %s460 = sshll.u32 %s459, 4
          %s461 = int_to_ptr.hbm [resolvable:$true] %s460
          %s462 = sshll.u32 %s454, 4
          %s463 = int_to_ptr.vmem [resolvable:$true] %s462
          %468 = dma.hbm_to_vmem [thread:$0]  %s461, 8192, %s463, %s451, 512, 512, 32
        $region60: #{model_forward.1} parent=43 // pred_fallthru
          _
        // Predicated region
        $region61: #{model_forward.1} parent=43 // pred_check
          %p469 = pneg %p294
        $region62: #{model_forward.1} parent=43 // pred_check_branch
          %471 = sbr.rel (%p469) target = $region64
        $region63: #{model_forward.1} parent=43 // pred_region
          %s472 = sand.u32 %s23, 1
          %s473 = scalar_lea.sflag [#allocation6], %s472
          %s474 = sand.u32 %s284, 1
          %s475 = smul.addr %s474, 512
          %s476 = scalar_lea.vmem [#allocation14], %s475
          %478 = vsyncadd %s473, 0
          %s479 = smul.addr %s23, 64
          %s480 = smul.addr %s479, 8
          %s481 = scalar_lea.hbm %s12, %s480
          %s482 = sshll.u32 %s481, 4
          %s483 = int_to_ptr.hbm [resolvable:$true] %s482
          %s484 = sshll.u32 %s476, 4
          %s485 = int_to_ptr.vmem [resolvable:$true] %s484
          %490 = dma.hbm_to_vmem [thread:$0]  %s483, 8192, %s485, %s473, 128, 128, 8
        $region64: #{model_forward.1} parent=43 // pred_fallthru
          _
      $region44: #{model_forward.1} parent=5 // pred_fallthru
        _
      %p491 = scmp.le.s32.totalorder 1, %s23
      %p492 = scmp.lt.s32.totalorder %s23, 3
      %p493 = pnand %p491, %p492
      %p494 = pneg %p493
      // Predicated region
      $region65: #{model_forward.1} parent=5 // pred_check
        _
      $region66: #{model_forward.1} parent=5 // pred_check_branch
        %496 = sbr.rel (%p493) target = $region68
      $region67: #{model_forward.1} parent=5 // pred_region
        %s497 = ssub.s32 %s23, 1
        // Predicated region
        $region69: #{model_forward.1} parent=67 // pred_check
          %p498 = pneg %p107
        $region70: #{model_forward.1} parent=67 // pred_check_branch
          %500 = sbr.rel (%p498) target = $region72
        $region71: #{model_forward.1} parent=67 // pred_region
          %502 = dma.done [#allocation6], 2048
        $region72: #{model_forward.1} parent=67 // pred_fallthru
          _
        // Predicated region
        $region73: #{model_forward.1} parent=67 // pred_check
          %p503 = pneg %p170
        $region74: #{model_forward.1} parent=67 // pred_check_branch
          %505 = sbr.rel (%p503) target = $region76
        $region75: #{model_forward.1} parent=67 // pred_region
          %507 = dma.done [#allocation9], 2048
        $region76: #{model_forward.1} parent=67 // pred_fallthru
          _
        %s508 = sand.u32 %s28, 1
        %s509 = scalar_lea.sflag [#allocation6], %s508
        %s510 = sand.u32 %s183, 1
        %s511 = smul.addr %s510, 32
        %s512 = scalar_lea.vmem [#allocation10], %s511
        // Predicated region
        $region77: #{model_forward.1} parent=67 // pred_check
          %p513 = pneg %p196
        $region78: #{model_forward.1} parent=67 // pred_check_branch
          %515 = sbr.rel (%p513) target = $region80
        $region79: #{model_forward.1} parent=67 // pred_region
          %517 = dma.done %s509, 512
        $region80: #{model_forward.1} parent=67 // pred_fallthru
          _
        %s518 = sand.u32 %s28, 1
        %s519 = scalar_lea.sflag [#allocation6], %s518
        %s520 = sand.u32 %s209, 1
        %s521 = smul.addr %s520, 384
        %s522 = scalar_lea.vmem [#allocation11], %s521
        // Predicated region
        $region81: #{model_forward.1} parent=67 // pred_check
          %p523 = pneg %p222
        $region82: #{model_forward.1} parent=67 // pred_check_branch
          %525 = sbr.rel (%p523) target = $region84
        $region83: #{model_forward.1} parent=67 // pred_region
          %527 = dma.done %s519, 6144
        $region84: #{model_forward.1} parent=67 // pred_fallthru
          _
        %s528 = sand.u32 %s28, 1
        %s529 = scalar_lea.sflag [#allocation6], %s528
        %s530 = sand.u32 %s235, 1
        %s531 = smul.addr %s530, 128
        %s532 = scalar_lea.vmem [#allocation12], %s531
        // Predicated region
        $region85: #{model_forward.1} parent=67 // pred_check
          %p533 = pneg %p248
        $region86: #{model_forward.1} parent=67 // pred_check_branch
          %535 = sbr.rel (%p533) target = $region88
        $region87: #{model_forward.1} parent=67 // pred_region
          %537 = dma.done %s529, 2048
        $region88: #{model_forward.1} parent=67 // pred_fallthru
          _
        %s538 = sand.u32 %s28, 1
        %s539 = scalar_lea.sflag [#allocation6], %s538
        %s540 = sand.u32 %s261, 1
        %s541 = smul.addr %s540, 512
        %s542 = scalar_lea.vmem [#allocation13], %s541
        // Predicated region
        $region89: #{model_forward.1} parent=67 // pred_check
          %p543 = pneg %p274
        $region90: #{model_forward.1} parent=67 // pred_check_branch
          %545 = sbr.rel (%p543) target = $region92
        $region91: #{model_forward.1} parent=67 // pred_region
          %547 = dma.done %s539, 8192
        $region92: #{model_forward.1} parent=67 // pred_fallthru
          _
        %s548 = sand.u32 %s28, 1
        %s549 = scalar_lea.sflag [#allocation6], %s548
        %s550 = sand.u32 %s287, 1
        %s551 = smul.addr %s550, 512
        %s552 = scalar_lea.vmem [#allocation14], %s551
        // Predicated region
        $region93: #{model_forward.1} parent=67 // pred_check
          %p553 = pneg %p300
        $region94: #{model_forward.1} parent=67 // pred_check_branch
          %555 = sbr.rel (%p553) target = $region96
        $region95: #{model_forward.1} parent=67 // pred_region
          %557 = dma.done %s549, 8192
        $region96: #{model_forward.1} parent=67 // pred_fallthru
          _
        %p558 = pneg %p44
        %p559 = pneg %p41
        %p560 = pneg %p65
        %p561 = pneg %p62
        %p562 = pneg %p86
        %p563 = pneg %p83
        %p564 = pneg %p107
        %p565 = pneg %p104
        %p566 = pneg %p128
        %p567 = pneg %p125
        %p568 = pneg %p149
        %p569 = pneg %p146
        %p570 = pneg %p170
        %p571 = pneg %p167
        %s572 = sand.u32 %s28, 1
        %s573 = scalar_lea.sflag [#allocation6], %s572
        %s574 = sand.u32 %s183, 1
        %s575 = smul.addr %s574, 32
        %s576 = scalar_lea.vmem [#allocation10], %s575
        %p577 = pneg %p196
        %p578 = pneg %p193
        %s579 = sand.u32 %s28, 1
        %s580 = scalar_lea.sflag [#allocation6], %s579
        %s581 = sand.u32 %s209, 1
        %s582 = smul.addr %s581, 384
        %s583 = scalar_lea.vmem [#allocation11], %s582
        %p584 = pneg %p222
        %p585 = pneg %p219
        %s586 = sand.u32 %s28, 1
        %s587 = scalar_lea.sflag [#allocation6], %s586
        %s588 = sand.u32 %s235, 1
        %s589 = smul.addr %s588, 128
        %s590 = scalar_lea.vmem [#allocation12], %s589
        %p591 = pneg %p248
        %p592 = pneg %p245
        %s593 = sand.u32 %s28, 1
        %s594 = scalar_lea.sflag [#allocation6], %s593
        %s595 = sand.u32 %s261, 1
        %s596 = smul.addr %s595, 512
        %s597 = scalar_lea.vmem [#allocation13], %s596
        %p598 = pneg %p274
        %p599 = pneg %p271
        %s600 = sand.u32 %s28, 1
        %s601 = scalar_lea.sflag [#allocation6], %s600
        %s602 = sand.u32 %s287, 1
        %s603 = smul.addr %s602, 512
        %s604 = scalar_lea.vmem [#allocation14], %s603
        %p605 = pneg %p300
        %p606 = pneg %p297
        %p607 = pneg %p321
        %p608 = pneg %p318
        %p609 = scmp.eq.s32.totalorder %s28, 0
        // Predicated region
        $region97: #{model_forward.1} parent=67 // pred_check
          %p610 = pneg %p609
        $region98: #{model_forward.1} parent=67 // pred_check_branch
          %612 = sbr.rel (%p610) target = $region100
        $region99: #{model_forward.1} parent=67 // pred_region
          %v613 = vld [vmem:[%s1] sm:$0xff]
          %v614 = vlaneseq
          %v615 = vand.u32 %v614, 127
          %616 = vset.pattern.permute.xlu0 0
          %617 = vperm.xlu0 %616, %v613
          %v618 = vpop.permute.xlu0 %617
          %vm619 = vcmp.eq.s32.totalorder %v615, %v618
          %v620 = vsel %vm619, 1, 0
          %v621 = vcvt.s32.f32 %v620
          %v622 = vld [vmem:[#allocation5] sm:$0xff]
          %v623 = vld [vmem:[#allocation5 + $0x8] sm:$0xff]
          %v624 = vld [vmem:[#allocation5 + $0x10] sm:$0xff]
          %v625 = vld [vmem:[#allocation5 + $0x18] sm:$0xff]
          %v626 = vld [vmem:[#allocation5 + $0x20] sm:$0xff]
          %v627 = vld [vmem:[#allocation5 + $0x28] sm:$0xff]
          %v628 = vld [vmem:[#allocation5 + $0x30] sm:$0xff]
          %v629 = vld [vmem:[#allocation5 + $0x38] sm:$0xff]
          %v630 = vld [vmem:[#allocation5 + $0x40] sm:$0xff]
          %v631 = vld [vmem:[#allocation5 + $0x48] sm:$0xff]
          %v632 = vld [vmem:[#allocation5 + $0x50] sm:$0xff]
          %v633 = vld [vmem:[#allocation5 + $0x58] sm:$0xff]
          %v634 = vld [vmem:[#allocation5 + $0x60] sm:$0xff]
          %v635 = vld [vmem:[#allocation5 + $0x68] sm:$0xff]
          %v636 = vld [vmem:[#allocation5 + $0x70] sm:$0xff]
          %v637 = vld [vmem:[#allocation5 + $0x78] sm:$0xff]
          %v638 = vld [vmem:[%s5] sm:$0xff]
          %639 = vmatpush.msra.mxu0 %v637
          %640 = vmatpush.msra.mxu0 %v636
          %641 = vmatpush.msra.mxu0 %v635
          %642 = vmatpush.msra.mxu0 %v634
          %643 = vmatpush.msra.mxu0 %v633
          %644 = vmatpush.msra.mxu0 %v632
          %645 = vmatpush.msra.mxu0 %v631
          %646 = vmatpush.msra.mxu0 %v630
          %647 = vmatpush.msra.mxu0 %v629
          %648 = vmatpush.msra.mxu0 %v628
          %649 = vmatpush.msra.mxu0 %v627
          %650 = vmatpush.msra.mxu0 %v626
          %651 = vmatpush.msra.mxu0 %v625
          %652 = vmatpush.msra.mxu0 %v624
          %653 = vmatpush.msra.mxu0 %v623
          %654 = vmatpush.msra.mxu0 %v622
          %655 = vmatmul.f32.gmra.mxu0 %v621
          %v656 = vpop.f32.mrf.mxu0
          %v657 = vadd.f32 %v638, %v656
          %658 = vdwg.mxu0
          %659 = vst [vmem:[#allocation2] sm:$0xff] %v657
          %vm660 = vcmask 0
          %661 = vst.msk [vmem:[#allocation15] sm:$0x1] %vm660, 0.0
        $region100: #{model_forward.1} parent=67 // pred_fallthru
          _
        %v662 = vld [vmem:[%s512] sm:$0xff]
        %v663 = vld [vmem:[%s512 + $0x8] sm:$0xff]
        %v664 = vld [vmem:[%s512 + $0x10] sm:$0xff]
        %v665 = vld [vmem:[%s512 + $0x18] sm:$0xff]
        %v666 = vld [vmem:[#allocation2] sm:$0xff]
        %667 = vadd.xlane.f32.xlu0 %v666
        %v668 = vpop.xlane.xlu0 %667
        %v669 = vrcp.pop 128.0
        %v670 = vmul.f32 128.0, %v669
        %v671 = vsub.f32 1.0, %v670
        %v672 = vmul.f32 %v669, %v671
        %v673 = vadd.f32 %v669, %v672
        %vm674 = vweird.f32 %v669
        %v675 = vsel %vm674, %v669, %v673
        %v676 = vmul.f32 %v668, %v675
        %v677 = vsub.f32 %v666, %v676
        %v678 = vmul.f32 %v677, %v677
        %679 = vadd.xlane.f32.xlu0 %v678
        %v680 = vpop.xlane.xlu0 %679
        %v681 = vmul.f32 %v680, %v675
        %v682 = vadd.f32 %v681, 1e-05
        %v683 = vrsqrt.pop %v682
        %v684 = vmul.f32 %v683, %v682
        %v685 = vmul.f32 %v684, %v683
        %v686 = vmul.f32 0.5, %v685
        %v687 = vsub.f32 1.5, %v686
        %v688 = vmul.f32 %v683, %v687
        %vm689 = vweird.f32 %v682
        %vm690 = vweird.f32 %v683
        %vm691 = vmor %vm689, %vm690
        %v692 = vsel %vm691, %v683, %v688
        %v693 = vmul.f32 %v677, %v692
        %v694 = vperm.slane %v662, 0
        %v695 = vmul.f32 %v693, %v694
        %v696 = vperm.slane %v662, 1
        %v697 = vadd.f32 %v695, %v696
        %v698 = vld [vmem:[%s522] sm:$0xff]
        %v699 = vld [vmem:[%s522 + $0x8] sm:$0xff]
        %v700 = vld [vmem:[%s522 + $0x10] sm:$0xff]
        %v701 = vld [vmem:[%s522 + $0x18] sm:$0xff]
        %v702 = vld [vmem:[%s522 + $0x20] sm:$0xff]
        %v703 = vld [vmem:[%s522 + $0x28] sm:$0xff]
        %v704 = vld [vmem:[%s522 + $0x30] sm:$0xff]
        %v705 = vld [vmem:[%s522 + $0x38] sm:$0xff]
        %v706 = vld [vmem:[%s522 + $0x40] sm:$0xff]
        %v707 = vld [vmem:[%s522 + $0x48] sm:$0xff]
        %v708 = vld [vmem:[%s522 + $0x50] sm:$0xff]
        %v709 = vld [vmem:[%s522 + $0x58] sm:$0xff]
        %v710 = vld [vmem:[%s522 + $0x60] sm:$0xff]
        %v711 = vld [vmem:[%s522 + $0x68] sm:$0xff]
        %v712 = vld [vmem:[%s522 + $0x70] sm:$0xff]
        %v713 = vld [vmem:[%s522 + $0x78] sm:$0xff]
        %v714 = vld [vmem:[%s522 + $0x80] sm:$0xff]
        %v715 = vld [vmem:[%s522 + $0x88] sm:$0xff]
        %v716 = vld [vmem:[%s522 + $0x90] sm:$0xff]
        %v717 = vld [vmem:[%s522 + $0x98] sm:$0xff]
        %v718 = vld [vmem:[%s522 + $0xa0] sm:$0xff]
        %v719 = vld [vmem:[%s522 + $0xa8] sm:$0xff]
        %v720 = vld [vmem:[%s522 + $0xb0] sm:$0xff]
        %v721 = vld [vmem:[%s522 + $0xb8] sm:$0xff]
        %v722 = vld [vmem:[%s522 + $0xc0] sm:$0xff]
        %v723 = vld [vmem:[%s522 + $0xc8] sm:$0xff]
        %v724 = vld [vmem:[%s522 + $0xd0] sm:$0xff]
        %v725 = vld [vmem:[%s522 + $0xd8] sm:$0xff]
        %v726 = vld [vmem:[%s522 + $0xe0] sm:$0xff]
        %v727 = vld [vmem:[%s522 + $0xe8] sm:$0xff]
        %v728 = vld [vmem:[%s522 + $0xf0] sm:$0xff]
        %v729 = vld [vmem:[%s522 + $0xf8] sm:$0xff]
        %v730 = vld [vmem:[%s522 + $0x100] sm:$0xff]
        %v731 = vld [vmem:[%s522 + $0x108] sm:$0xff]
        %v732 = vld [vmem:[%s522 + $0x110] sm:$0xff]
        %v733 = vld [vmem:[%s522 + $0x118] sm:$0xff]
        %v734 = vld [vmem:[%s522 + $0x120] sm:$0xff]
        %v735 = vld [vmem:[%s522 + $0x128] sm:$0xff]
        %v736 = vld [vmem:[%s522 + $0x130] sm:$0xff]
        %v737 = vld [vmem:[%s522 + $0x138] sm:$0xff]
        %v738 = vld [vmem:[%s522 + $0x140] sm:$0xff]
        %v739 = vld [vmem:[%s522 + $0x148] sm:$0xff]
        %v740 = vld [vmem:[%s522 + $0x150] sm:$0xff]
        %v741 = vld [vmem:[%s522 + $0x158] sm:$0xff]
        %v742 = vld [vmem:[%s522 + $0x160] sm:$0xff]
        %v743 = vld [vmem:[%s522 + $0x168] sm:$0xff]
        %v744 = vld [vmem:[%s522 + $0x170] sm:$0xff]
        %v745 = vld [vmem:[%s522 + $0x178] sm:$0xff]
        %v746 = vperm.slane %v662, 6
        %v747 = vperm.slane %v663, 6
        %v748 = vperm.slane %v664, 6
        %749 = vmatpush.msra.mxu0 %v743
        %750 = vmatpush.msra.mxu0 %v740
        %751 = vmatpush.msra.mxu0 %v737
        %752 = vmatpush.msra.mxu0 %v734
        %753 = vmatpush.msra.mxu0 %v731
        %754 = vmatpush.msra.mxu0 %v728
        %755 = vmatpush.msra.mxu0 %v725
        %756 = vmatpush.msra.mxu0 %v722
        %757 = vmatpush.msra.mxu0 %v719
        %758 = vmatpush.msra.mxu0 %v716
        %759 = vmatpush.msra.mxu0 %v713
        %760 = vmatpush.msra.mxu0 %v710
        %761 = vmatpush.msra.mxu0 %v707
        %762 = vmatpush.msra.mxu0 %v704
        %763 = vmatpush.msra.mxu0 %v701
        %764 = vmatpush.msra.mxu0 %v698
        %765 = vmatmul.f32.gmra.mxu0 %v697
        %v766 = vpop.f32.mrf.mxu0
        %v767 = vadd.f32 %v746, %v766
        %768 = vdwg.mxu0
        %769 = vmatpush.msra.mxu0 %v744
        %770 = vmatpush.msra.mxu0 %v741
        %771 = vmatpush.msra.mxu0 %v738
        %772 = vmatpush.msra.mxu0 %v735
        %773 = vmatpush.msra.mxu0 %v732
        %774 = vmatpush.msra.mxu0 %v729
        %775 = vmatpush.msra.mxu0 %v726
        %776 = vmatpush.msra.mxu0 %v723
        %777 = vmatpush.msra.mxu0 %v720
        %778 = vmatpush.msra.mxu0 %v717
        %779 = vmatpush.msra.mxu0 %v714
        %780 = vmatpush.msra.mxu0 %v711
        %781 = vmatpush.msra.mxu0 %v708
        %782 = vmatpush.msra.mxu0 %v705
        %783 = vmatpush.msra.mxu0 %v702
        %784 = vmatpush.msra.mxu0 %v699
        %785 = vmatmul.f32.gmra.mxu0 %v697
        %v786 = vpop.f32.mrf.mxu0
        %v787 = vadd.f32 %v747, %v786
        %788 = vdwg.mxu0
        %789 = vmatpush.msra.mxu0 %v745
        %790 = vmatpush.msra.mxu0 %v742
        %791 = vmatpush.msra.mxu0 %v739
        %792 = vmatpush.msra.mxu0 %v736
        %793 = vmatpush.msra.mxu0 %v733
        %794 = vmatpush.msra.mxu0 %v730
        %795 = vmatpush.msra.mxu0 %v727
        %796 = vmatpush.msra.mxu0 %v724
        %797 = vmatpush.msra.mxu0 %v721
        %798 = vmatpush.msra.mxu0 %v718
        %799 = vmatpush.msra.mxu0 %v715
        %800 = vmatpush.msra.mxu0 %v712
        %801 = vmatpush.msra.mxu0 %v709
        %802 = vmatpush.msra.mxu0 %v706
        %803 = vmatpush.msra.mxu0 %v703
        %804 = vmatpush.msra.mxu0 %v700
        %805 = vmatmul.f32.gmra.mxu0 %v697
        %v806 = vpop.f32.mrf.mxu0
        %v807 = vadd.f32 %v748, %v806
        %808 = vdwg.mxu0
        %v809 = vlaneseq
        %v810 = vshrl.u32 %v809, 7
        %v811 = vlaneseq
        %v812 = vand.u32 %v811, 127
        %vm813 = vcmp.le.s32.totalorder %v812, %v810
        %vm814 = vcmask 261120
        %v816 = vsel %vm814, %v767, 0
        %v819 = vsel %vm814, %v787, 0
        %821 = vmatpush.xpose.msra.mxu0 0.0
        %822 = vmatpush.xpose.msra.mxu0 0.0
        %823 = vmatpush.xpose.msra.mxu0 0.0
        %824 = vmatpush.xpose.msra.mxu0 0.0
        %825 = vmatpush.xpose.msra.mxu0 0.0
        %826 = vmatpush.xpose.msra.mxu0 0.0
        %827 = vmatpush.xpose.msra.mxu0 0.0
        %828 = vmatpush.xpose.msra.mxu0 0.0
        %829 = vmatpush.xpose.msra.mxu0 0.0
        %830 = vmatpush.xpose.msra.mxu0 0.0
        %831 = vmatpush.xpose.msra.mxu0 0.0
        %832 = vmatpush.xpose.msra.mxu0 0.0
        %833 = vmatpush.xpose.msra.mxu0 0.0
        %834 = vmatpush.xpose.msra.mxu0 0.0
        %835 = vmatpush.xpose.msra.mxu0 0.0
        %836 = vmatpush.xpose.msra.mxu0 %v819
        %837 = vmatmul.f32.gmra.mxu0 %v816
        %v838 = vpop.f32.mrf.mxu0
        %v839 = vadd.f32 0.0, %v838
        %840 = vdwg.mxu0
        %v841 = vmul.f32 %v839, 0.17677669
        %v842 = vsel %vm813, %v841, -1e+30
        %vm843 = vcmask 64512
        %v844 = vsel %vm843, %v842, -inf
        %845 = vmax.xlane.f32.xlu0 %v844
        %v846 = vpop.xlane.xlu0 %845
        %v847 = vsub.f32 %v842, %v846
        %v848 = vmul.f32 %v847, 1.442695
        %v849 = vpow.pop %v848
        %v850 = vsel %vm843, %v849, 0.0
        %851 = vadd.xlane.f32.xlu0 %v850
        %v852 = vpop.xlane.xlu0 %851
        %v853 = vrcp.pop %v852
        %v854 = vmul.f32 %v849, %v853
        %v856 = vsel %vm843, %v854, 0
        %858 = vmatpush.msra.mxu0 0.0
        %859 = vmatpush.msra.mxu0 0.0
        %860 = vmatpush.msra.mxu0 0.0
        %861 = vmatpush.msra.mxu0 0.0
        %862 = vmatpush.msra.mxu0 0.0
        %863 = vmatpush.msra.mxu0 0.0
        %864 = vmatpush.msra.mxu0 0.0
        %865 = vmatpush.msra.mxu0 0.0
        %866 = vmatpush.msra.mxu0 0.0
        %867 = vmatpush.msra.mxu0 0.0
        %868 = vmatpush.msra.mxu0 0.0
        %869 = vmatpush.msra.mxu0 0.0
        %870 = vmatpush.msra.mxu0 0.0
        %871 = vmatpush.msra.mxu0 0.0
        %872 = vmatpush.msra.mxu0 0.0
        %873 = vmatpush.msra.mxu0 %v807
        %874 = vmatmul.f32.gmra.mxu0 %v856
        %v875 = vpop.f32.mrf.mxu0
        %v876 = vadd.f32 0.0, %v875
        %877 = vdwg.mxu0
        %878 = vrot.lane.b32.xlu0 %v767, 96
        %v879 = vpop.permute.xlu0 %878
        %880 = vrot.lane.b32.xlu0 %v787, 96
        %v881 = vpop.permute.xlu0 %880
        %v882 = vsel %vm814, %v879, 0
        %v884 = vsel %vm814, %v881, 0
        %886 = vmatpush.xpose.msra.mxu0 0.0
        %887 = vmatpush.xpose.msra.mxu0 0.0
        %888 = vmatpush.xpose.msra.mxu0 0.0
        %889 = vmatpush.xpose.msra.mxu0 0.0
        %890 = vmatpush.xpose.msra.mxu0 0.0
        %891 = vmatpush.xpose.msra.mxu0 0.0
        %892 = vmatpush.xpose.msra.mxu0 0.0
        %893 = vmatpush.xpose.msra.mxu0 0.0
        %894 = vmatpush.xpose.msra.mxu0 0.0
        %895 = vmatpush.xpose.msra.mxu0 0.0
        %896 = vmatpush.xpose.msra.mxu0 0.0
        %897 = vmatpush.xpose.msra.mxu0 0.0
        %898 = vmatpush.xpose.msra.mxu0 0.0
        %899 = vmatpush.xpose.msra.mxu0 0.0
        %900 = vmatpush.xpose.msra.mxu0 0.0
        %901 = vmatpush.xpose.msra.mxu0 %v884
        %902 = vmatmul.f32.gmra.mxu0 %v882
        %v903 = vpop.f32.mrf.mxu0
        %v904 = vadd.f32 0.0, %v903
        %905 = vdwg.mxu0
        %v906 = vmul.f32 %v904, 0.17677669
        %v907 = vsel %vm813, %v906, -1e+30
        %v908 = vsel %vm843, %v907, -inf
        %909 = vmax.xlane.f32.xlu0 %v908
        %v910 = vpop.xlane.xlu0 %909
        %v911 = vsub.f32 %v907, %v910
        %v912 = vmul.f32 %v911, 1.442695
        %v913 = vpow.pop %v912
        %v914 = vsel %vm843, %v913, 0.0
        %915 = vadd.xlane.f32.xlu0 %v914
        %v916 = vpop.xlane.xlu0 %915
        %v917 = vrcp.pop %v916
        %v918 = vmul.f32 %v913, %v917
        %920 = vrot.lane.b32.xlu0 %v807, 96
        %v921 = vpop.permute.xlu0 %920
        %v924 = vsel %vm843, %v918, 0
        %926 = vmatpush.msra.mxu0 0.0
        %927 = vmatpush.msra.mxu0 0.0
        %928 = vmatpush.msra.mxu0 0.0
        %929 = vmatpush.msra.mxu0 0.0
        %930 = vmatpush.msra.mxu0 0.0
        %931 = vmatpush.msra.mxu0 0.0
        %932 = vmatpush.msra.mxu0 0.0
        %933 = vmatpush.msra.mxu0 0.0
        %934 = vmatpush.msra.mxu0 0.0
        %935 = vmatpush.msra.mxu0 0.0
        %936 = vmatpush.msra.mxu0 0.0
        %937 = vmatpush.msra.mxu0 0.0
        %938 = vmatpush.msra.mxu0 0.0
        %939 = vmatpush.msra.mxu0 0.0
        %940 = vmatpush.msra.mxu0 0.0
        %941 = vmatpush.msra.mxu0 %v921
        %942 = vmatmul.f32.gmra.mxu0 %v924
        %v943 = vpop.f32.mrf.mxu0
        %v944 = vadd.f32 0.0, %v943
        %945 = vdwg.mxu0
        %946 = vrot.lane.b32.xlu0 %v767, 64
        %v947 = vpop.permute.xlu0 %946
        %948 = vrot.lane.b32.xlu0 %v787, 64
        %v949 = vpop.permute.xlu0 %948
        %v950 = vsel %vm814, %v947, 0
        %v952 = vsel %vm814, %v949, 0
        %954 = vmatpush.xpose.msra.mxu0 0.0
        %955 = vmatpush.xpose.msra.mxu0 0.0
        %956 = vmatpush.xpose.msra.mxu0 0.0
        %957 = vmatpush.xpose.msra.mxu0 0.0
        %958 = vmatpush.xpose.msra.mxu0 0.0
        %959 = vmatpush.xpose.msra.mxu0 0.0
        %960 = vmatpush.xpose.msra.mxu0 0.0
        %961 = vmatpush.xpose.msra.mxu0 0.0
        %962 = vmatpush.xpose.msra.mxu0 0.0
        %963 = vmatpush.xpose.msra.mxu0 0.0
        %964 = vmatpush.xpose.msra.mxu0 0.0
        %965 = vmatpush.xpose.msra.mxu0 0.0
        %966 = vmatpush.xpose.msra.mxu0 0.0
        %967 = vmatpush.xpose.msra.mxu0 0.0
        %968 = vmatpush.xpose.msra.mxu0 0.0
        %969 = vmatpush.xpose.msra.mxu0 %v952
        %970 = vmatmul.f32.gmra.mxu0 %v950
        %v971 = vpop.f32.mrf.mxu0
        %v972 = vadd.f32 0.0, %v971
        %973 = vdwg.mxu0
        %v974 = vmul.f32 %v972, 0.17677669
        %v975 = vsel %vm813, %v974, -1e+30
        %v976 = vsel %vm843, %v975, -inf
        %977 = vmax.xlane.f32.xlu0 %v976
        %v978 = vpop.xlane.xlu0 %977
        %v979 = vsub.f32 %v975, %v978
        %v980 = vmul.f32 %v979, 1.442695
        %v981 = vpow.pop %v980
        %v982 = vsel %vm843, %v981, 0.0
        %983 = vadd.xlane.f32.xlu0 %v982
        %v984 = vpop.xlane.xlu0 %983
        %v985 = vrcp.pop %v984
        %v986 = vmul.f32 %v981, %v985
        %987 = vrot.lane.b32.xlu0 %v807, 64
        %v988 = vpop.permute.xlu0 %987
        %v991 = vsel %vm843, %v986, 0
        %993 = vmatpush.msra.mxu0 0.0
        %994 = vmatpush.msra.mxu0 0.0
        %995 = vmatpush.msra.mxu0 0.0
        %996 = vmatpush.msra.mxu0 0.0
        %997 = vmatpush.msra.mxu0 0.0
        %998 = vmatpush.msra.mxu0 0.0
        %999 = vmatpush.msra.mxu0 0.0
        %1000 = vmatpush.msra.mxu0 0.0
        %1001 = vmatpush.msra.mxu0 0.0
        %1002 = vmatpush.msra.mxu0 0.0
        %1003 = vmatpush.msra.mxu0 0.0
        %1004 = vmatpush.msra.mxu0 0.0
        %1005 = vmatpush.msra.mxu0 0.0
        %1006 = vmatpush.msra.mxu0 0.0
        %1007 = vmatpush.msra.mxu0 0.0
        %1008 = vmatpush.msra.mxu0 %v988
        %1009 = vmatmul.f32.gmra.mxu0 %v991
        %v1010 = vpop.f32.mrf.mxu0
        %v1011 = vadd.f32 0.0, %v1010
        %1012 = vdwg.mxu0
        %1013 = vrot.lane.b32.xlu0 %v767, 32
        %v1014 = vpop.permute.xlu0 %1013
        %1015 = vrot.lane.b32.xlu0 %v787, 32
        %v1016 = vpop.permute.xlu0 %1015
        %v1017 = vsel %vm814, %v1014, 0
        %v1019 = vsel %vm814, %v1016, 0
        %1021 = vmatpush.xpose.msra.mxu0 0.0
        %1022 = vmatpush.xpose.msra.mxu0 0.0
        %1023 = vmatpush.xpose.msra.mxu0 0.0
        %1024 = vmatpush.xpose.msra.mxu0 0.0
        %1025 = vmatpush.xpose.msra.mxu0 0.0
        %1026 = vmatpush.xpose.msra.mxu0 0.0
        %1027 = vmatpush.xpose.msra.mxu0 0.0
        %1028 = vmatpush.xpose.msra.mxu0 0.0
        %1029 = vmatpush.xpose.msra.mxu0 0.0
        %1030 = vmatpush.xpose.msra.mxu0 0.0
        %1031 = vmatpush.xpose.msra.mxu0 0.0
        %1032 = vmatpush.xpose.msra.mxu0 0.0
        %1033 = vmatpush.xpose.msra.mxu0 0.0
        %1034 = vmatpush.xpose.msra.mxu0 0.0
        %1035 = vmatpush.xpose.msra.mxu0 0.0
        %1036 = vmatpush.xpose.msra.mxu0 %v1019
        %1037 = vmatmul.f32.gmra.mxu0 %v1017
        %v1038 = vpop.f32.mrf.mxu0
        %v1039 = vadd.f32 0.0, %v1038
        %1040 = vdwg.mxu0
        %v1041 = vmul.f32 %v1039, 0.17677669
        %v1042 = vsel %vm813, %v1041, -1e+30
        %v1043 = vsel %vm843, %v1042, -inf
        %1044 = vmax.xlane.f32.xlu0 %v1043
        %v1045 = vpop.xlane.xlu0 %1044
        %v1046 = vsub.f32 %v1042, %v1045
        %v1047 = vmul.f32 %v1046, 1.442695
        %v1048 = vpow.pop %v1047
        %v1049 = vsel %vm843, %v1048, 0.0
        %1050 = vadd.xlane.f32.xlu0 %v1049
        %v1051 = vpop.xlane.xlu0 %1050
        %v1052 = vrcp.pop %v1051
        %v1053 = vmul.f32 %v1048, %v1052
        %1054 = vrot.lane.b32.xlu0 %v807, 32
        %v1055 = vpop.permute.xlu0 %1054
        %v1058 = vsel %vm843, %v1053, 0
        %1060 = vmatpush.msra.mxu0 0.0
        %1061 = vmatpush.msra.mxu0 0.0
        %1062 = vmatpush.msra.mxu0 0.0
        %1063 = vmatpush.msra.mxu0 0.0
        %1064 = vmatpush.msra.mxu0 0.0
        %1065 = vmatpush.msra.mxu0 0.0
        %1066 = vmatpush.msra.mxu0 0.0
        %1067 = vmatpush.msra.mxu0 0.0
        %1068 = vmatpush.msra.mxu0 0.0
        %1069 = vmatpush.msra.mxu0 0.0
        %1070 = vmatpush.msra.mxu0 0.0
        %1071 = vmatpush.msra.mxu0 0.0
        %1072 = vmatpush.msra.mxu0 0.0
        %1073 = vmatpush.msra.mxu0 0.0
        %1074 = vmatpush.msra.mxu0 0.0
        %1075 = vmatpush.msra.mxu0 %v1055
        %1076 = vmatmul.f32.gmra.mxu0 %v1058
        %v1077 = vpop.f32.mrf.mxu0
        %v1078 = vadd.f32 0.0, %v1077
        %1079 = vdwg.mxu0
        %1081 = vrot.lane.b32.xlu0 %v944, 32
        %v1082 = vpop.permute.xlu0 %1081
        %1085 = vrot.lane.b32.xlu0 %v1011, 64
        %v1086 = vpop.permute.xlu0 %1085
        %1089 = vrot.lane.b32.xlu0 %v1078, 96
        %v1090 = vpop.permute.xlu0 %1089
        %v1092 = vsel %vm814, %v876, %v1082
        %vm1093 = vcmask 523264
        %v1094 = vsel %vm1093, %v1092, %v1086
        %vm1095 = vcmask 785408
        %v1096 = vsel %vm1095, %v1094, %v1090
        %v1097 = vld [vmem:[%s532] sm:$0xff]
        %v1098 = vld [vmem:[%s532 + $0x8] sm:$0xff]
        %v1099 = vld [vmem:[%s532 + $0x10] sm:$0xff]
        %v1100 = vld [vmem:[%s532 + $0x18] sm:$0xff]
        %v1101 = vld [vmem:[%s532 + $0x20] sm:$0xff]
        %v1102 = vld [vmem:[%s532 + $0x28] sm:$0xff]
        %v1103 = vld [vmem:[%s532 + $0x30] sm:$0xff]
        %v1104 = vld [vmem:[%s532 + $0x38] sm:$0xff]
        %v1105 = vld [vmem:[%s532 + $0x40] sm:$0xff]
        %v1106 = vld [vmem:[%s532 + $0x48] sm:$0xff]
        %v1107 = vld [vmem:[%s532 + $0x50] sm:$0xff]
        %v1108 = vld [vmem:[%s532 + $0x58] sm:$0xff]
        %v1109 = vld [vmem:[%s532 + $0x60] sm:$0xff]
        %v1110 = vld [vmem:[%s532 + $0x68] sm:$0xff]
        %v1111 = vld [vmem:[%s532 + $0x70] sm:$0xff]
        %v1112 = vld [vmem:[%s532 + $0x78] sm:$0xff]
        %1113 = vmatpush.msra.mxu0 %v1112
        %1114 = vmatpush.msra.mxu0 %v1111
        %1115 = vmatpush.msra.mxu0 %v1110
        %1116 = vmatpush.msra.mxu0 %v1109
        %1117 = vmatpush.msra.mxu0 %v1108
        %1118 = vmatpush.msra.mxu0 %v1107
        %1119 = vmatpush.msra.mxu0 %v1106
        %1120 = vmatpush.msra.mxu0 %v1105
        %1121 = vmatpush.msra.mxu0 %v1104
        %1122 = vmatpush.msra.mxu0 %v1103
        %1123 = vmatpush.msra.mxu0 %v1102
        %1124 = vmatpush.msra.mxu0 %v1101
        %1125 = vmatpush.msra.mxu0 %v1100
        %1126 = vmatpush.msra.mxu0 %v1099
        %1127 = vmatpush.msra.mxu0 %v1098
        %1128 = vmatpush.msra.mxu0 %v1097
        %1129 = vmatmul.f32.gmra.mxu0 %v1096
        %v1130 = vpop.f32.mrf.mxu0
        %v1131 = vadd.f32 0.0, %v1130
        %1132 = vdwg.mxu0
        %v1133 = vadd.f32 %v666, %v1131
        %v1134 = vperm.slane %v662, 4
        %v1135 = vadd.f32 %v1133, %v1134
        %1136 = vadd.xlane.f32.xlu0 %v1135
        %v1137 = vpop.xlane.xlu0 %1136
        %v1138 = vmul.f32 %v1137, %v675
        %v1139 = vsub.f32 %v1135, %v1138
        %v1140 = vmul.f32 %v1139, %v1139
        %1141 = vadd.xlane.f32.xlu0 %v1140
        %v1142 = vpop.xlane.xlu0 %1141
        %v1143 = vmul.f32 %v1142, %v675
        %v1144 = vadd.f32 %v1143, 1e-05
        %v1145 = vrsqrt.pop %v1144
        %v1146 = vmul.f32 %v1145, %v1144
        %v1147 = vmul.f32 %v1146, %v1145
        %v1148 = vmul.f32 0.5, %v1147
        %v1149 = vsub.f32 1.5, %v1148
        %v1150 = vmul.f32 %v1145, %v1149
        %vm1151 = vweird.f32 %v1144
        %vm1152 = vweird.f32 %v1145
        %vm1153 = vmor %vm1151, %vm1152
        %v1154 = vsel %vm1153, %v1145, %v1150
        %v1155 = vmul.f32 %v1139, %v1154
        %v1156 = vperm.slane %v662, 2
        %v1157 = vmul.f32 %v1155, %v1156
        %v1158 = vperm.slane %v662, 3
        %v1159 = vadd.f32 %v1157, %v1158
        %v1160 = vld [vmem:[%s542] sm:$0xff]
        %v1161 = vld [vmem:[%s542 + $0x8] sm:$0xff]
        %v1162 = vld [vmem:[%s542 + $0x10] sm:$0xff]
        %v1163 = vld [vmem:[%s542 + $0x18] sm:$0xff]
        %v1164 = vld [vmem:[%s542 + $0x20] sm:$0xff]
        %v1165 = vld [vmem:[%s542 + $0x28] sm:$0xff]
        %v1166 = vld [vmem:[%s542 + $0x30] sm:$0xff]
        %v1167 = vld [vmem:[%s542 + $0x38] sm:$0xff]
        %v1168 = vld [vmem:[%s542 + $0x40] sm:$0xff]
        %v1169 = vld [vmem:[%s542 + $0x48] sm:$0xff]
        %v1170 = vld [vmem:[%s542 + $0x50] sm:$0xff]
        %v1171 = vld [vmem:[%s542 + $0x58] sm:$0xff]
        %v1172 = vld [vmem:[%s542 + $0x60] sm:$0xff]
        %v1173 = vld [vmem:[%s542 + $0x68] sm:$0xff]
        %v1174 = vld [vmem:[%s542 + $0x70] sm:$0xff]
        %v1175 = vld [vmem:[%s542 + $0x78] sm:$0xff]
        %v1176 = vld [vmem:[%s542 + $0x80] sm:$0xff]
        %v1177 = vld [vmem:[%s542 + $0x88] sm:$0xff]
        %v1178 = vld [vmem:[%s542 + $0x90] sm:$0xff]
        %v1179 = vld [vmem:[%s542 + $0x98] sm:$0xff]
        %v1180 = vld [vmem:[%s542 + $0xa0] sm:$0xff]
        %v1181 = vld [vmem:[%s542 + $0xa8] sm:$0xff]
        %v1182 = vld [vmem:[%s542 + $0xb0] sm:$0xff]
        %v1183 = vld [vmem:[%s542 + $0xb8] sm:$0xff]
        %v1184 = vld [vmem:[%s542 + $0xc0] sm:$0xff]
        %v1185 = vld [vmem:[%s542 + $0xc8] sm:$0xff]
        %v1186 = vld [vmem:[%s542 + $0xd0] sm:$0xff]
        %v1187 = vld [vmem:[%s542 + $0xd8] sm:$0xff]
        %v1188 = vld [vmem:[%s542 + $0xe0] sm:$0xff]
        %v1189 = vld [vmem:[%s542 + $0xe8] sm:$0xff]
        %v1190 = vld [vmem:[%s542 + $0xf0] sm:$0xff]
        %v1191 = vld [vmem:[%s542 + $0xf8] sm:$0xff]
        %v1192 = vld [vmem:[%s542 + $0x100] sm:$0xff]
        %v1193 = vld [vmem:[%s542 + $0x108] sm:$0xff]
        %v1194 = vld [vmem:[%s542 + $0x110] sm:$0xff]
        %v1195 = vld [vmem:[%s542 + $0x118] sm:$0xff]
        %v1196 = vld [vmem:[%s542 + $0x120] sm:$0xff]
        %v1197 = vld [vmem:[%s542 + $0x128] sm:$0xff]
        %v1198 = vld [vmem:[%s542 + $0x130] sm:$0xff]
        %v1199 = vld [vmem:[%s542 + $0x138] sm:$0xff]
        %v1200 = vld [vmem:[%s542 + $0x140] sm:$0xff]
        %v1201 = vld [vmem:[%s542 + $0x148] sm:$0xff]
        %v1202 = vld [vmem:[%s542 + $0x150] sm:$0xff]
        %v1203 = vld [vmem:[%s542 + $0x158] sm:$0xff]
        %v1204 = vld [vmem:[%s542 + $0x160] sm:$0xff]
        %v1205 = vld [vmem:[%s542 + $0x168] sm:$0xff]
        %v1206 = vld [vmem:[%s542 + $0x170] sm:$0xff]
        %v1207 = vld [vmem:[%s542 + $0x178] sm:$0xff]
        %v1208 = vld [vmem:[%s542 + $0x180] sm:$0xff]
        %v1209 = vld [vmem:[%s542 + $0x188] sm:$0xff]
        %v1210 = vld [vmem:[%s542 + $0x190] sm:$0xff]
        %v1211 = vld [vmem:[%s542 + $0x198] sm:$0xff]
        %v1212 = vld [vmem:[%s542 + $0x1a0] sm:$0xff]
        %v1213 = vld [vmem:[%s542 + $0x1a8] sm:$0xff]
        %v1214 = vld [vmem:[%s542 + $0x1b0] sm:$0xff]
        %v1215 = vld [vmem:[%s542 + $0x1b8] sm:$0xff]
        %v1216 = vld [vmem:[%s542 + $0x1c0] sm:$0xff]
        %v1217 = vld [vmem:[%s542 + $0x1c8] sm:$0xff]
        %v1218 = vld [vmem:[%s542 + $0x1d0] sm:$0xff]
        %v1219 = vld [vmem:[%s542 + $0x1d8] sm:$0xff]
        %v1220 = vld [vmem:[%s542 + $0x1e0] sm:$0xff]
        %v1221 = vld [vmem:[%s542 + $0x1e8] sm:$0xff]
        %v1222 = vld [vmem:[%s542 + $0x1f0] sm:$0xff]
        %v1223 = vld [vmem:[%s542 + $0x1f8] sm:$0xff]
        %v1224 = vperm.slane %v662, 7
        %v1225 = vperm.slane %v663, 7
        %v1226 = vperm.slane %v664, 7
        %v1227 = vperm.slane %v665, 7
        %1228 = vmatpush.msra.mxu0 %v1220
        %1229 = vmatpush.msra.mxu0 %v1216
        %1230 = vmatpush.msra.mxu0 %v1212
        %1231 = vmatpush.msra.mxu0 %v1208
        %1232 = vmatpush.msra.mxu0 %v1204
        %1233 = vmatpush.msra.mxu0 %v1200
        %1234 = vmatpush.msra.mxu0 %v1196
        %1235 = vmatpush.msra.mxu0 %v1192
        %1236 = vmatpush.msra.mxu0 %v1188
        %1237 = vmatpush.msra.mxu0 %v1184
        %1238 = vmatpush.msra.mxu0 %v1180
        %1239 = vmatpush.msra.mxu0 %v1176
        %1240 = vmatpush.msra.mxu0 %v1172
        %1241 = vmatpush.msra.mxu0 %v1168
        %1242 = vmatpush.msra.mxu0 %v1164
        %1243 = vmatpush.msra.mxu0 %v1160
        %1244 = vmatmul.f32.gmra.mxu0 %v1159
        %v1245 = vpop.f32.mrf.mxu0
        %v1246 = vadd.f32 %v1224, %v1245
        %1247 = vdwg.mxu0
        %1248 = vmatpush.msra.mxu0 %v1221
        %1249 = vmatpush.msra.mxu0 %v1217
        %1250 = vmatpush.msra.mxu0 %v1213
        %1251 = vmatpush.msra.mxu0 %v1209
        %1252 = vmatpush.msra.mxu0 %v1205
        %1253 = vmatpush.msra.mxu0 %v1201
        %1254 = vmatpush.msra.mxu0 %v1197
        %1255 = vmatpush.msra.mxu0 %v1193
        %1256 = vmatpush.msra.mxu0 %v1189
        %1257 = vmatpush.msra.mxu0 %v1185
        %1258 = vmatpush.msra.mxu0 %v1181
        %1259 = vmatpush.msra.mxu0 %v1177
        %1260 = vmatpush.msra.mxu0 %v1173
        %1261 = vmatpush.msra.mxu0 %v1169
        %1262 = vmatpush.msra.mxu0 %v1165
        %1263 = vmatpush.msra.mxu0 %v1161
        %1264 = vmatmul.f32.gmra.mxu0 %v1159
        %v1265 = vpop.f32.mrf.mxu0
        %v1266 = vadd.f32 %v1225, %v1265
        %1267 = vdwg.mxu0
        %1268 = vmatpush.msra.mxu0 %v1222
        %1269 = vmatpush.msra.mxu0 %v1218
        %1270 = vmatpush.msra.mxu0 %v1214
        %1271 = vmatpush.msra.mxu0 %v1210
        %1272 = vmatpush.msra.mxu0 %v1206
        %1273 = vmatpush.msra.mxu0 %v1202
        %1274 = vmatpush.msra.mxu0 %v1198
        %1275 = vmatpush.msra.mxu0 %v1194
        %1276 = vmatpush.msra.mxu0 %v1190
        %1277 = vmatpush.msra.mxu0 %v1186
        %1278 = vmatpush.msra.mxu0 %v1182
        %1279 = vmatpush.msra.mxu0 %v1178
        %1280 = vmatpush.msra.mxu0 %v1174
        %1281 = vmatpush.msra.mxu0 %v1170
        %1282 = vmatpush.msra.mxu0 %v1166
        %1283 = vmatpush.msra.mxu0 %v1162
        %1284 = vmatmul.f32.gmra.mxu0 %v1159
        %v1285 = vpop.f32.mrf.mxu0
        %v1286 = vadd.f32 %v1226, %v1285
        %1287 = vdwg.mxu0
        %1288 = vmatpush.msra.mxu0 %v1223
        %1289 = vmatpush.msra.mxu0 %v1219
        %1290 = vmatpush.msra.mxu0 %v1215
        %1291 = vmatpush.msra.mxu0 %v1211
        %1292 = vmatpush.msra.mxu0 %v1207
        %1293 = vmatpush.msra.mxu0 %v1203
        %1294 = vmatpush.msra.mxu0 %v1199
        %1295 = vmatpush.msra.mxu0 %v1195
        %1296 = vmatpush.msra.mxu0 %v1191
        %1297 = vmatpush.msra.mxu0 %v1187
        %1298 = vmatpush.msra.mxu0 %v1183
        %1299 = vmatpush.msra.mxu0 %v1179
        %1300 = vmatpush.msra.mxu0 %v1175
        %1301 = vmatpush.msra.mxu0 %v1171
        %1302 = vmatpush.msra.mxu0 %v1167
        %1303 = vmatpush.msra.mxu0 %v1163
        %1304 = vmatmul.f32.gmra.mxu0 %v1159
        %v1305 = vpop.f32.mrf.mxu0
        %v1306 = vadd.f32 %v1227, %v1305
        %1307 = vdwg.mxu0
        %v1308 = vmul.f32 %v1246, 0.5
        %v1309 = vmul.f32 %v1266, 0.5
        %v1310 = vmul.f32 %v1286, 0.5
        %v1311 = vmul.f32 %v1306, 0.5
        %v1312 = vmul.f32 %v1246, 0.044715
        %v1313 = vmul.f32 %v1266, 0.044715
        %v1314 = vmul.f32 %v1286, 0.044715
        %v1315 = vmul.f32 %v1306, 0.044715
        %v1316 = vmul.f32 %v1312, %v1246
        %v1317 = vmul.f32 %v1313, %v1266
        %v1318 = vmul.f32 %v1314, %v1286
        %v1319 = vmul.f32 %v1315, %v1306
        %v1320 = vmul.f32 %v1316, %v1246
        %v1321 = vmul.f32 %v1317, %v1266
        %v1322 = vmul.f32 %v1318, %v1286
        %v1323 = vmul.f32 %v1319, %v1306
        %v1324 = vadd.f32 %v1246, %v1320
        %v1325 = vadd.f32 %v1266, %v1321
        %v1326 = vadd.f32 %v1286, %v1322
        %v1327 = vadd.f32 %v1306, %v1323
        %v1328 = vmul.f32 %v1324, 0.7978846
        %v1329 = vmul.f32 %v1325, 0.7978846
        %v1330 = vmul.f32 %v1326, 0.7978846
        %v1331 = vmul.f32 %v1327, 0.7978846
        %v1332 = vtanh.pop %v1328
        %v1333 = vtanh.pop %v1329
        %v1334 = vtanh.pop %v1330
        %v1335 = vtanh.pop %v1331
        %v1336 = vadd.f32 %v1332, 1.0
        %v1337 = vadd.f32 %v1333, 1.0
        %v1338 = vadd.f32 %v1334, 1.0
        %v1339 = vadd.f32 %v1335, 1.0
        %v1340 = vmul.f32 %v1308, %v1336
        %v1341 = vmul.f32 %v1309, %v1337
        %v1342 = vmul.f32 %v1310, %v1338
        %v1343 = vmul.f32 %v1311, %v1339
        %v1344 = vld [vmem:[%s552] sm:$0xff]
        %v1345 = vld [vmem:[%s552 + $0x8] sm:$0xff]
        %v1346 = vld [vmem:[%s552 + $0x10] sm:$0xff]
        %v1347 = vld [vmem:[%s552 + $0x18] sm:$0xff]
        %v1348 = vld [vmem:[%s552 + $0x20] sm:$0xff]
        %v1349 = vld [vmem:[%s552 + $0x28] sm:$0xff]
        %v1350 = vld [vmem:[%s552 + $0x30] sm:$0xff]
        %v1351 = vld [vmem:[%s552 + $0x38] sm:$0xff]
        %v1352 = vld [vmem:[%s552 + $0x40] sm:$0xff]
        %v1353 = vld [vmem:[%s552 + $0x48] sm:$0xff]
        %v1354 = vld [vmem:[%s552 + $0x50] sm:$0xff]
        %v1355 = vld [vmem:[%s552 + $0x58] sm:$0xff]
        %v1356 = vld [vmem:[%s552 + $0x60] sm:$0xff]
        %v1357 = vld [vmem:[%s552 + $0x68] sm:$0xff]
        %v1358 = vld [vmem:[%s552 + $0x70] sm:$0xff]
        %v1359 = vld [vmem:[%s552 + $0x78] sm:$0xff]
        %v1360 = vld [vmem:[%s552 + $0x80] sm:$0xff]
        %v1361 = vld [vmem:[%s552 + $0x88] sm:$0xff]
        %v1362 = vld [vmem:[%s552 + $0x90] sm:$0xff]
        %v1363 = vld [vmem:[%s552 + $0x98] sm:$0xff]
        %v1364 = vld [vmem:[%s552 + $0xa0] sm:$0xff]
        %v1365 = vld [vmem:[%s552 + $0xa8] sm:$0xff]
        %v1366 = vld [vmem:[%s552 + $0xb0] sm:$0xff]
        %v1367 = vld [vmem:[%s552 + $0xb8] sm:$0xff]
        %v1368 = vld [vmem:[%s552 + $0xc0] sm:$0xff]
        %v1369 = vld [vmem:[%s552 + $0xc8] sm:$0xff]
        %v1370 = vld [vmem:[%s552 + $0xd0] sm:$0xff]
        %v1371 = vld [vmem:[%s552 + $0xd8] sm:$0xff]
        %v1372 = vld [vmem:[%s552 + $0xe0] sm:$0xff]
        %v1373 = vld [vmem:[%s552 + $0xe8] sm:$0xff]
        %v1374 = vld [vmem:[%s552 + $0xf0] sm:$0xff]
        %v1375 = vld [vmem:[%s552 + $0xf8] sm:$0xff]
        %v1376 = vld [vmem:[%s552 + $0x100] sm:$0xff]
        %v1377 = vld [vmem:[%s552 + $0x108] sm:$0xff]
        %v1378 = vld [vmem:[%s552 + $0x110] sm:$0xff]
        %v1379 = vld [vmem:[%s552 + $0x118] sm:$0xff]
        %v1380 = vld [vmem:[%s552 + $0x120] sm:$0xff]
        %v1381 = vld [vmem:[%s552 + $0x128] sm:$0xff]
        %v1382 = vld [vmem:[%s552 + $0x130] sm:$0xff]
        %v1383 = vld [vmem:[%s552 + $0x138] sm:$0xff]
        %v1384 = vld [vmem:[%s552 + $0x140] sm:$0xff]
        %v1385 = vld [vmem:[%s552 + $0x148] sm:$0xff]
        %v1386 = vld [vmem:[%s552 + $0x150] sm:$0xff]
        %v1387 = vld [vmem:[%s552 + $0x158] sm:$0xff]
        %v1388 = vld [vmem:[%s552 + $0x160] sm:$0xff]
        %v1389 = vld [vmem:[%s552 + $0x168] sm:$0xff]
        %v1390 = vld [vmem:[%s552 + $0x170] sm:$0xff]
        %v1391 = vld [vmem:[%s552 + $0x178] sm:$0xff]
        %v1392 = vld [vmem:[%s552 + $0x180] sm:$0xff]
        %v1393 = vld [vmem:[%s552 + $0x188] sm:$0xff]
        %v1394 = vld [vmem:[%s552 + $0x190] sm:$0xff]
        %v1395 = vld [vmem:[%s552 + $0x198] sm:$0xff]
        %v1396 = vld [vmem:[%s552 + $0x1a0] sm:$0xff]
        %v1397 = vld [vmem:[%s552 + $0x1a8] sm:$0xff]
        %v1398 = vld [vmem:[%s552 + $0x1b0] sm:$0xff]
        %v1399 = vld [vmem:[%s552 + $0x1b8] sm:$0xff]
        %v1400 = vld [vmem:[%s552 + $0x1c0] sm:$0xff]
        %v1401 = vld [vmem:[%s552 + $0x1c8] sm:$0xff]
        %v1402 = vld [vmem:[%s552 + $0x1d0] sm:$0xff]
        %v1403 = vld [vmem:[%s552 + $0x1d8] sm:$0xff]
        %v1404 = vld [vmem:[%s552 + $0x1e0] sm:$0xff]
        %v1405 = vld [vmem:[%s552 + $0x1e8] sm:$0xff]
        %v1406 = vld [vmem:[%s552 + $0x1f0] sm:$0xff]
        %v1407 = vld [vmem:[%s552 + $0x1f8] sm:$0xff]
        %1408 = vmatpush.msra.mxu0 %v1359
        %1409 = vmatpush.msra.mxu0 %v1358
        %1410 = vmatpush.msra.mxu0 %v1357
        %1411 = vmatpush.msra.mxu0 %v1356
        %1412 = vmatpush.msra.mxu0 %v1355
        %1413 = vmatpush.msra.mxu0 %v1354
        %1414 = vmatpush.msra.mxu0 %v1353
        %1415 = vmatpush.msra.mxu0 %v1352
        %1416 = vmatpush.msra.mxu0 %v1351
        %1417 = vmatpush.msra.mxu0 %v1350
        %1418 = vmatpush.msra.mxu0 %v1349
        %1419 = vmatpush.msra.mxu0 %v1348
        %1420 = vmatpush.msra.mxu0 %v1347
        %1421 = vmatpush.msra.mxu0 %v1346
        %1422 = vmatpush.msra.mxu0 %v1345
        %1423 = vmatpush.msra.mxu0 %v1344
        %1424 = vmatmul.f32.gmra.mxu0 %v1340
        %v1425 = vpop.f32.mrf.mxu0
        %v1426 = vadd.f32 0.0, %v1425
        %1427 = vdwg.mxu0
        %1428 = vmatpush.msra.mxu0 %v1375
        %1429 = vmatpush.msra.mxu0 %v1374
        %1430 = vmatpush.msra.mxu0 %v1373
        %1431 = vmatpush.msra.mxu0 %v1372
        %1432 = vmatpush.msra.mxu0 %v1371
        %1433 = vmatpush.msra.mxu0 %v1370
        %1434 = vmatpush.msra.mxu0 %v1369
        %1435 = vmatpush.msra.mxu0 %v1368
        %1436 = vmatpush.msra.mxu0 %v1367
        %1437 = vmatpush.msra.mxu0 %v1366
        %1438 = vmatpush.msra.mxu0 %v1365
        %1439 = vmatpush.msra.mxu0 %v1364
        %1440 = vmatpush.msra.mxu0 %v1363
        %1441 = vmatpush.msra.mxu0 %v1362
        %1442 = vmatpush.msra.mxu0 %v1361
        %1443 = vmatpush.msra.mxu0 %v1360
        %1444 = vmatmul.f32.gmra.mxu0 %v1341
        %v1445 = vpop.f32.mrf.mxu0
        %v1446 = vadd.f32 %v1426, %v1445
        %1447 = vdwg.mxu0
        %1448 = vmatpush.msra.mxu0 %v1391
        %1449 = vmatpush.msra.mxu0 %v1390
        %1450 = vmatpush.msra.mxu0 %v1389
        %1451 = vmatpush.msra.mxu0 %v1388
        %1452 = vmatpush.msra.mxu0 %v1387
        %1453 = vmatpush.msra.mxu0 %v1386
        %1454 = vmatpush.msra.mxu0 %v1385
        %1455 = vmatpush.msra.mxu0 %v1384
        %1456 = vmatpush.msra.mxu0 %v1383
        %1457 = vmatpush.msra.mxu0 %v1382
        %1458 = vmatpush.msra.mxu0 %v1381
        %1459 = vmatpush.msra.mxu0 %v1380
        %1460 = vmatpush.msra.mxu0 %v1379
        %1461 = vmatpush.msra.mxu0 %v1378
        %1462 = vmatpush.msra.mxu0 %v1377
        %1463 = vmatpush.msra.mxu0 %v1376
        %1464 = vmatmul.f32.gmra.mxu0 %v1342
        %v1465 = vpop.f32.mrf.mxu0
        %v1466 = vadd.f32 %v1446, %v1465
        %1467 = vdwg.mxu0
        %1468 = vmatpush.msra.mxu0 %v1407
        %1469 = vmatpush.msra.mxu0 %v1406
        %1470 = vmatpush.msra.mxu0 %v1405
        %1471 = vmatpush.msra.mxu0 %v1404
        %1472 = vmatpush.msra.mxu0 %v1403
        %1473 = vmatpush.msra.mxu0 %v1402
        %1474 = vmatpush.msra.mxu0 %v1401
        %1475 = vmatpush.msra.mxu0 %v1400
        %1476 = vmatpush.msra.mxu0 %v1399
        %1477 = vmatpush.msra.mxu0 %v1398
        %1478 = vmatpush.msra.mxu0 %v1397
        %1479 = vmatpush.msra.mxu0 %v1396
        %1480 = vmatpush.msra.mxu0 %v1395
        %1481 = vmatpush.msra.mxu0 %v1394
        %1482 = vmatpush.msra.mxu0 %v1393
        %1483 = vmatpush.msra.mxu0 %v1392
        %1484 = vmatmul.f32.gmra.mxu0 %v1343
        %v1485 = vpop.f32.mrf.mxu0
        %v1486 = vadd.f32 %v1466, %v1485
        %1487 = vdwg.mxu0
        %v1488 = vadd.f32 %v1135, %v1486
        %v1489 = vperm.slane %v662, 5
        %v1490 = vadd.f32 %v1488, %v1489
        %1491 = vst [vmem:[#allocation2] sm:$0xff] %v1490
        %p1492 = scmp.eq.s32.totalorder %s28, 1
        // Predicated region
        $region101: #{model_forward.1} parent=67 // pred_check
          %p1493 = pneg %p1492
        $region102: #{model_forward.1} parent=67 // pred_check_branch
          %1495 = sbr.rel (%p1493) target = $region104
        $region103: #{model_forward.1} parent=67 // pred_region
          %v1496 = vld [vmem:[%s6] sm:$0x1]
          %v1497 = vld [vmem:[%s6 + $0x1] sm:$0x1]
          %1498 = vadd.xlane.f32.xlu0 %v1490
          %v1499 = vpop.xlane.xlu0 %1498
          %v1500 = vmul.f32 %v1499, %v675
          %v1501 = vsub.f32 %v1490, %v1500
          %v1502 = vmul.f32 %v1501, %v1501
          %1503 = vadd.xlane.f32.xlu0 %v1502
          %v1504 = vpop.xlane.xlu0 %1503
          %v1505 = vmul.f32 %v1504, %v675
          %v1506 = vadd.f32 %v1505, 1e-05
          %v1507 = vrsqrt.pop %v1506
          %v1508 = vmul.f32 %v1507, %v1506
          %v1509 = vmul.f32 %v1508, %v1507
          %v1510 = vmul.f32 0.5, %v1509
          %v1511 = vsub.f32 1.5, %v1510
          %v1512 = vmul.f32 %v1507, %v1511
          %vm1513 = vweird.f32 %v1506
          %vm1514 = vweird.f32 %v1507
          %vm1515 = vmor %vm1513, %vm1514
          %v1516 = vsel %vm1515, %v1507, %v1512
          %v1517 = vmul.f32 %v1501, %v1516
          %v1518 = vperm.slane %v1496, 0
          %v1519 = vmul.f32 %v1517, %v1518
          %v1520 = vperm.slane %v1497, 0
          %v1521 = vadd.f32 %v1519, %v1520
          %v1522 = vld [vmem:[#allocation5] sm:$0xff]
          %v1523 = vld [vmem:[#allocation5 + $0x8] sm:$0xff]
          %v1524 = vld [vmem:[#allocation5 + $0x10] sm:$0xff]
          %v1525 = vld [vmem:[#allocation5 + $0x18] sm:$0xff]
          %v1526 = vld [vmem:[#allocation5 + $0x20] sm:$0xff]
          %v1527 = vld [vmem:[#allocation5 + $0x28] sm:$0xff]
          %v1528 = vld [vmem:[#allocation5 + $0x30] sm:$0xff]
          %v1529 = vld [vmem:[#allocation5 + $0x38] sm:$0xff]
          %v1530 = vld [vmem:[#allocation5 + $0x40] sm:$0xff]
          %v1531 = vld [vmem:[#allocation5 + $0x48] sm:$0xff]
          %v1532 = vld [vmem:[#allocation5 + $0x50] sm:$0xff]
          %v1533 = vld [vmem:[#allocation5 + $0x58] sm:$0xff]
          %v1534 = vld [vmem:[#allocation5 + $0x60] sm:$0xff]
          %v1535 = vld [vmem:[#allocation5 + $0x68] sm:$0xff]
          %v1536 = vld [vmem:[#allocation5 + $0x70] sm:$0xff]
          %v1537 = vld [vmem:[#allocation5 + $0x78] sm:$0xff]
          %1538 = vmatpush.xpose.msra.mxu0 %v1537
          %1539 = vmatpush.xpose.msra.mxu0 %v1536
          %1540 = vmatpush.xpose.msra.mxu0 %v1535
          %1541 = vmatpush.xpose.msra.mxu0 %v1534
          %1542 = vmatpush.xpose.msra.mxu0 %v1533
          %1543 = vmatpush.xpose.msra.mxu0 %v1532
          %1544 = vmatpush.xpose.msra.mxu0 %v1531
          %1545 = vmatpush.xpose.msra.mxu0 %v1530
          %1546 = vmatpush.xpose.msra.mxu0 %v1529
          %1547 = vmatpush.xpose.msra.mxu0 %v1528
          %1548 = vmatpush.xpose.msra.mxu0 %v1527
          %1549 = vmatpush.xpose.msra.mxu0 %v1526
          %1550 = vmatpush.xpose.msra.mxu0 %v1525
          %1551 = vmatpush.xpose.msra.mxu0 %v1524
          %1552 = vmatpush.xpose.msra.mxu0 %v1523
          %1553 = vmatpush.xpose.msra.mxu0 %v1522
          %1554 = vmatmul.f32.gmra.mxu0 %v1521
          %v1555 = vpop.f32.mrf.mxu0
          %v1556 = vadd.f32 0.0, %v1555
          %1557 = vdwg.mxu0
          %1558 = vmax.xlane.f32.xlu0 %v1556
          %v1559 = vpop.xlane.xlu0 %1558
          %v1560 = vsub.f32 %v1556, %v1559
          %v1561 = vmul.f32 %v1560, 1.442695
          %v1562 = vpow.pop %v1561
          %1563 = vadd.xlane.f32.xlu0 %v1562
          %v1564 = vpop.xlane.xlu0 %1563
          %v1565 = vlog2.pop %v1564
          %v1566 = vmul.f32 %v1565, 0.6931472
          %v1567 = vadd.f32 %v1559, %v1566
          %v1568 = vsub.f32 %v1556, %v1567
          %v1569 = vld [vmem:[%s2] sm:$0xff]
          %1570 = vset.pattern.permute.xlu0 0
          %1571 = vperm.xlu0 %1570, %v1569
          %v1572 = vpop.permute.xlu0 %1571
          %vm1573 = vcmp.eq.s32.totalorder %v812, %v1572
          %v1574 = vsel %vm1573, 1, 0
          %v1575 = vcvt.s32.f32 %v1574
          %vm1576 = vcmp.ne.s32.totalorder %v1569, 4294967196
          %v1577 = vsel %vm1576, 1, 0
          %v1578 = vcvt.s32.f32 %v1577
          %v1579 = vmul.f32 %v1575, %v1568
          %1580 = vadd.xlane.f32.xlu0 %v1579
          %v1581 = vpop.xlane.xlu0 %1580
          %v1582 = vsub.f32 0.0, %v1581
          %v1583 = vmul.f32 %v1582, %v1578
          %vm1584 = vcmask 7168
          %v1585 = vsel %vm1584, %v1583, 0.0
          %v1586 = vrot.slane %v1585, 4
          %v1587 = vadd.f32 %v1585, %v1586
          %v1588 = vrot.slane %v1587, 2
          %v1589 = vadd.f32 %v1587, %v1588
          %v1590 = vrot.slane %v1589, 1
          %v1591 = vadd.f32 %v1589, %v1590
          %v1592 = vsel %vm1584, %v1578, 0.0
          %v1593 = vrot.slane %v1592, 4
          %v1594 = vadd.f32 %v1592, %v1593
          %v1595 = vrot.slane %v1594, 2
          %v1596 = vadd.f32 %v1594, %v1595
          %v1597 = vrot.slane %v1596, 1
          %v1598 = vadd.f32 %v1596, %v1597
          %v1599 = vmax.f32 %v1598, 1.0
          %v1600 = vrcp.pop %v1599
          %v1601 = vmul.f32 %v1599, %v1600
          %v1602 = vsub.f32 1.0, %v1601
          %v1603 = vmul.f32 %v1600, %v1602
          %v1604 = vadd.f32 %v1600, %v1603
          %vm1605 = vweird.f32 %v1599
          %vm1606 = vweird.f32 %v1600
          %vm1607 = vmor %vm1605, %vm1606
          %v1608 = vsel %vm1607, %v1600, %v1604
          %v1609 = vand.u32 2147483647, %v1599
          %vm1610 = vcmp.eq.f32.partialorder %v1609, 8.507059e+37
          %v1611 = vand.u32 %v1599, 2147483648
          %v1612 = vor.u32 1.1754944e-38, %v1611
          %v1613 = vsel %vm1610, %v1612, %v1608
          %v1614 = vmul.f32 %v1591, %v1613
          %s1615 = sld [smem:[#allocation4]]
          %s1616 = scalar_lea.vmem [#allocation2], %s1615
          %v1617 = vld [vmem:[%s1616] sm:$0x1]
          %vm1618 = vcmask 1040384
          %v1619 = vsel %vm1618, %v1617, 0.0
          %1620 = vadd.xlane.f32.xlu0 %v1619
          %v1621 = vpop.xlane.xlu0 %1620
          %v1622 = vmul.f32 %v1621, %v675
          %v1623 = vsub.f32 %v1617, %v1622
          %v1624 = vmul.f32 %v1623, %v1623
          %v1625 = vsel %vm1618, %v1624, 0.0
          %1626 = vadd.xlane.f32.xlu0 %v1625
          %v1627 = vpop.xlane.xlu0 %1626
          %v1628 = vmul.f32 %v1627, %v675
          %v1629 = vadd.f32 %v1628, 1e-05
          %v1630 = vrsqrt.pop %v1629
          %v1631 = vmul.f32 %v1630, %v1629
          %v1632 = vmul.f32 %v1631, %v1630
          %v1633 = vmul.f32 0.5, %v1632
          %v1634 = vsub.f32 1.5, %v1633
          %v1635 = vmul.f32 %v1630, %v1634
          %vm1636 = vweird.f32 %v1629
          %vm1637 = vweird.f32 %v1630
          %vm1638 = vmor %vm1636, %vm1637
          %v1639 = vsel %vm1638, %v1630, %v1635
          %v1640 = vmul.f32 %v1623, %v1639
          %v1641 = vmul.f32 %v1640, %v1496
          %v1642 = vadd.f32 %v1641, %v1497
          %v1643 = vld [vmem:[#allocation8] sm:$0xff]
          %v1644 = vld [vmem:[#allocation8 + $0x8] sm:$0xff]
          %v1645 = vld [vmem:[#allocation8 + $0x10] sm:$0xff]
          %v1646 = vld [vmem:[#allocation8 + $0x18] sm:$0xff]
          %v1647 = vld [vmem:[#allocation8 + $0x20] sm:$0xff]
          %v1648 = vld [vmem:[#allocation8 + $0x28] sm:$0xff]
          %v1649 = vld [vmem:[#allocation8 + $0x30] sm:$0xff]
          %v1650 = vld [vmem:[#allocation8 + $0x38] sm:$0xff]
          %v1651 = vld [vmem:[#allocation8 + $0x40] sm:$0xff]
          %v1652 = vld [vmem:[#allocation8 + $0x48] sm:$0xff]
          %v1653 = vld [vmem:[#allocation8 + $0x50] sm:$0xff]
          %v1654 = vld [vmem:[#allocation8 + $0x58] sm:$0xff]
          %v1655 = vld [vmem:[#allocation8 + $0x60] sm:$0xff]
          %v1656 = vld [vmem:[#allocation8 + $0x68] sm:$0xff]
          %v1657 = vld [vmem:[#allocation8 + $0x70] sm:$0xff]
          %v1658 = vld [vmem:[#allocation8 + $0x78] sm:$0xff]
          %1659 = vmatpush.xpose.msra.mxu0 %v1658
          %1660 = vmatpush.xpose.msra.mxu0 %v1657
          %1661 = vmatpush.xpose.msra.mxu0 %v1656
          %1662 = vmatpush.xpose.msra.mxu0 %v1655
          %1663 = vmatpush.xpose.msra.mxu0 %v1654
          %1664 = vmatpush.xpose.msra.mxu0 %v1653
          %1665 = vmatpush.xpose.msra.mxu0 %v1652
          %1666 = vmatpush.xpose.msra.mxu0 %v1651
          %1667 = vmatpush.xpose.msra.mxu0 %v1650
          %1668 = vmatpush.xpose.msra.mxu0 %v1649
          %1669 = vmatpush.xpose.msra.mxu0 %v1648
          %1670 = vmatpush.xpose.msra.mxu0 %v1647
          %1671 = vmatpush.xpose.msra.mxu0 %v1646
          %1672 = vmatpush.xpose.msra.mxu0 %v1645
          %1673 = vmatpush.xpose.msra.mxu0 %v1644
          %1674 = vmatpush.xpose.msra.mxu0 %v1643
          %1675 = vmatmul.f32.gmra.mxu0 %v1642
          %v1676 = vpop.f32.mrf.mxu0
          %v1677 = vadd.f32 0.0, %v1676
          %1678 = vdwg.mxu0
          %v1679 = vsel %vm1618, %v1677, -inf
          %1680 = vmax.xlane.f32.xlu0 %v1679
          %v1681 = vpop.xlane.xlu0 %1680
          %v1682 = vsub.f32 %v1677, %v1681
          %v1683 = vmul.f32 %v1682, 1.442695
          %v1684 = vpow.pop %v1683
          %v1685 = vsel %vm1618, %v1684, 0.0
          %1686 = vadd.xlane.f32.xlu0 %v1685
          %v1687 = vpop.xlane.xlu0 %1686
          %v1688 = vlog2.pop %v1687
          %v1689 = vmul.f32 %v1688, 0.6931472
          %v1690 = vadd.f32 %v1681, %v1689
          %v1691 = vsub.f32 %v1677, %v1690
          %v1692 = vld [vmem:[%s3] sm:$0xff]
          %1693 = vset.pattern.permute.xlu0 0
          %1694 = vperm.xlu0 %1693, %v1692
          %v1695 = vpop.permute.xlu0 %1694
          %vm1696 = vcmp.eq.s32.totalorder %v812, %v1695
          %v1697 = vsel %vm1696, 1, 0
          %v1698 = vcvt.s32.f32 %v1697
          %vm1699 = vcmp.ne.s32.totalorder %v1692, 4294967196
          %v1700 = vsel %vm1699, 1, 0
          %v1701 = vcvt.s32.f32 %v1700
          %v1702 = vperm.slane %v1691, 0
          %v1703 = vmul.f32 %v1698, %v1702
          %1704 = vadd.xlane.f32.xlu0 %v1703
          %v1705 = vpop.xlane.xlu0 %1704
          %v1706 = vsub.f32 0.0, %v1705
          %v1707 = vmul.f32 %v1706, %v1701
          %v1708 = vsel %vm1584, %v1707, 0.0
          %v1709 = vrot.slane %v1708, 4
          %v1710 = vadd.f32 %v1708, %v1709
          %v1711 = vrot.slane %v1710, 2
          %v1712 = vadd.f32 %v1710, %v1711
          %v1713 = vrot.slane %v1712, 1
          %v1714 = vadd.f32 %v1712, %v1713
          %v1715 = vsel %vm1584, %v1701, 0.0
          %v1716 = vrot.slane %v1715, 4
          %v1717 = vadd.f32 %v1715, %v1716
          %v1718 = vrot.slane %v1717, 2
          %v1719 = vadd.f32 %v1717, %v1718
          %v1720 = vrot.slane %v1719, 1
          %v1721 = vadd.f32 %v1719, %v1720
          %v1722 = vmax.f32 %v1721, 1.0
          %v1723 = vrcp.pop %v1722
          %v1724 = vmul.f32 %v1722, %v1723
          %v1725 = vsub.f32 1.0, %v1724
          %v1726 = vmul.f32 %v1723, %v1725
          %v1727 = vadd.f32 %v1723, %v1726
          %vm1728 = vweird.f32 %v1722
          %vm1729 = vweird.f32 %v1723
          %vm1730 = vmor %vm1728, %vm1729
          %v1731 = vsel %vm1730, %v1723, %v1727
          %v1732 = vand.u32 2147483647, %v1722
          %vm1733 = vcmp.eq.f32.partialorder %v1732, 8.507059e+37
          %v1734 = vand.u32 %v1722, 2147483648
          %v1735 = vor.u32 1.1754944e-38, %v1734
          %v1736 = vsel %vm1733, %v1735, %v1731
          %v1737 = vmul.f32 %v1714, %v1736
          %v1738 = vmul.f32 %v1737, 0.5
          %v1739 = vadd.f32 %v1738, %v1614
          %vm1740 = vcmask 0
          %1741 = vst.msk [vmem:[#allocation15] sm:$0x1] %vm1740, %v1739
        $region104: #{model_forward.1} parent=67 // pred_fallthru
          _
        // Predicated region
        $region105: #{model_forward.1} parent=67 // pred_check
          %p1742 = pneg %p318
        $region106: #{model_forward.1} parent=67 // pred_check_branch
          %1744 = sbr.rel (%p1742) target = $region108
        $region107: #{model_forward.1} parent=67 // pred_region
          %1746 = vsyncadd [#allocation7], 0
          %s1748 = sshll.u32 [#allocation15], 4
          %s1749 = int_to_ptr.vmem [resolvable:$true] %s1748
          %s1750 = sshll.u32 %s13, 4
          %s1751 = int_to_ptr.hbm [resolvable:$true] %s1750
          %1753 = dma.vmem_to_hbm [thread:$0]  %s1749, 16, %s1751, [#allocation7]
        $region108: #{model_forward.1} parent=67 // pred_fallthru
          _
        // Predicated region
        $region109: #{model_forward.1} parent=67 // pred_check
          %p1754 = pneg %p318
        $region110: #{model_forward.1} parent=67 // pred_check_branch
          %1756 = sbr.rel (%p1754) target = $region112
        $region111: #{model_forward.1} parent=67 // pred_region
          %1758 = dma.done [#allocation7], 16
        $region112: #{model_forward.1} parent=67 // pred_fallthru
          _
      $region68: #{model_forward.1} parent=5 // pred_fallthru
        _
      %p1759 = scmp.le.s32.totalorder 2, %s23
      // Predicated region
      $region113: #{model_forward.1} parent=5 // pred_check
        %p1760 = pneg %p1759
      $region114: #{model_forward.1} parent=5 // pred_check_branch
        %1762 = sbr.rel (%p1760) target = $region116
      $region115: #{model_forward.1} parent=5 // pred_region
        %s1763 = ssub.s32 %s23, 2
      $region116: #{model_forward.1} parent=5 // pred_fallthru
        _
    $region6: #{model_forward.1} parent=1 // loop_footer
      %s27 = sadd.s32 1, %s23
    $region7: #{model_forward.1} parent=1 // loop_footer_branch
      %22 = sbr.rel target = $region3
    $region8: #{model_forward.1} parent=1 // loop_exit
      _
    %1764 = vsyncpa [#allocation6], 1
    %s1765 = scalar_lea.sflag [#allocation6], 1
    %1766 = vsyncpa %s1765, 1
    %1767 = vsyncpa [#allocation9], 1
    %1768 = vsyncpa [#allocation7], 1
    %s1769 = scalar_lea.sflag [#allocation7], 1
    %1770 = vsyncpa %s1769, 1

</llo_original>
